<compile_context>
chip_gen: v6e
topology: v6e:2x2x1
jax: 0.10.0
libtpu: 0.0.40
codegen_flags: <defaults>
</compile_context>

<pallas_src>
import functools

import jax
import jax.numpy as jnp
from jax import lax
from jax.experimental import pallas as pl
from jax.experimental.pallas import tpu as pltpu


def _grounding_head_kernel(det_ref, wct_ref, bc_ref, gamma_ref, beta_ref,
                           w1_ref, b1_ref, w2_ref, b2_ref, w3_ref, b3_ref,
                           rowsel_ref, rowsel_t_ref, gsel_ref, gsel_t_ref,
                           out_ref, *, tokens_per_sample, cpg, eps):
    # det_ref: (b_blk * N, C_in) token-major slab for this batch block.
    x = det_ref[...]
    # ---- 1x1 conv == token @ channel matmul (weight pre-transposed in wrapper) ----
    y = jnp.dot(x, wct_ref[...], preferred_element_type=jnp.float32) + bc_ref[...]   # (BN, C)

    # ---- GroupNorm: per-(sample, group) stats via tiny mask matmuls --------------
    rowsel = rowsel_ref[...]          # (b_blk, b_blk*N)  sample-membership of rows
    gsel = gsel_ref[...]              # (C, G)            group-membership of channels
    s1 = jnp.dot(rowsel, y, preferred_element_type=jnp.float32)         # (b_blk, C)
    s2 = jnp.dot(rowsel, y * y, preferred_element_type=jnp.float32)     # (b_blk, C)
    gsum = jnp.dot(s1, gsel, preferred_element_type=jnp.float32)        # (b_blk, G)
    gsumsq = jnp.dot(s2, gsel, preferred_element_type=jnp.float32)      # (b_blk, G)

    count = float(cpg * tokens_per_sample)
    gmean = gsum / count
    gvar = jnp.maximum(gsumsq / count - gmean * gmean, 0.0)   # clamp: one-pass var can go < 0
    grstd = lax.rsqrt(gvar + eps)

    # ---- fold GroupNorm into a per-(sample, channel) affine ----------------------
    gsel_t = gsel_t_ref[...]                                                   # (G, C)
    rstd_bc = jnp.dot(grstd, gsel_t, preferred_element_type=jnp.float32)       # (b_blk, C)
    mean_bc = jnp.dot(gmean, gsel_t, preferred_element_type=jnp.float32)       # (b_blk, C)
    scale_bc = rstd_bc * gamma_ref[...]                                        # gamma: (1, C)
    shift_bc = beta_ref[...] - mean_bc * scale_bc

    # Broadcast the per-sample affine onto its token rows (tiny (BN,b_blk)x(b_blk,C) matmuls),
    # then a single fused FMA pass over y.
    rowsel_t = rowsel_t_ref[...]                                               # (b_blk*N, b_blk)
    scale_rows = jnp.dot(rowsel_t, scale_bc, preferred_element_type=jnp.float32)
    shift_rows = jnp.dot(rowsel_t, shift_bc, preferred_element_type=jnp.float32)
    yn = y * scale_rows + shift_rows                                           # (BN, C)

    # ---- MLP (Linear+ReLU, Linear+ReLU, Linear) already in token-major layout ----
    h = jnp.maximum(jnp.dot(yn, w1_ref[...], preferred_element_type=jnp.float32) + b1_ref[...], 0.0)
    h = jnp.maximum(jnp.dot(h, w2_ref[...], preferred_element_type=jnp.float32) + b2_ref[...], 0.0)
    h = jnp.dot(h, w3_ref[...], preferred_element_type=jnp.float32) + b3_ref[...]   # (BN, 4)

    out_ref[...] = jax.nn.sigmoid(h)


def direct_window_reg_grounding_header(det, params, *, num_groups, eps=1e-5):
    """det: (B, grounding_output_dim, det_token_num) -> (B, det_token_num, 4)."""
    batch, c_in, n = det.shape
    wc, bc, gamma, beta, w1, b1, w2, b2, w3, b3 = params
    c_out = wc.shape[0]
    assert c_out % num_groups == 0
    cpg = c_out // num_groups

    # Samples per grid step: take the whole batch when small; for large batches pick
    # a divisor whose row-block stays (8,*)-aligned.  Working set per step is tiny
    # (<1 MiB) so this comfortably fits even v7x's 64 MiB VMEM.
    if batch <= 8:
        b_blk = batch
    else:
        cands = [d for d in range(8, 0, -1) if batch % d == 0 and (d * n) % 8 == 0]
        b_blk = cands[0] if cands else batch
    grid = batch // b_blk

    # --- wrapper-side layout plumbing (cheap XLA ops, outside the kernel) ---------
    det_tok = jnp.transpose(det, (0, 2, 1)).reshape(batch * n, c_in)   # token-major, lane-dense C
    wct = wc.T                                                         # (C_in, C_out)

    # Precomputed membership masks (hoisted out of the kernel).
    rowsel = (jnp.arange(b_blk * n)[None, :] // n ==
              jnp.arange(b_blk)[:, None]).astype(jnp.float32)          # (b_blk, b_blk*N)
    rowsel_t = rowsel.T                                                # (b_blk*N, b_blk)
    gsel = (jnp.arange(c_out)[:, None] // cpg ==
            jnp.arange(num_groups)[None, :]).astype(jnp.float32)       # (C, G)
    gsel_t = gsel.T                                                    # (G, C)

    kernel = functools.partial(_grounding_head_kernel,
                               tokens_per_sample=n, cpg=cpg, eps=eps)
    rep = lambda i: (0, 0)   # replicated (whole-array) params for every grid step

    out_flat = pl.pallas_call(
        kernel,
        out_shape=jax.ShapeDtypeStruct((batch * n, 4), jnp.float32),
        grid_spec=pltpu.PrefetchScalarGridSpec(
            num_scalar_prefetch=0,
            grid=(grid,),
            in_specs=[
                pl.BlockSpec((b_blk * n, c_in), lambda i: (i, 0)),
                pl.BlockSpec(wct.shape, rep),
                pl.BlockSpec(bc.shape, rep),
                pl.BlockSpec(gamma.shape, rep),
                pl.BlockSpec(beta.shape, rep),
                pl.BlockSpec(w1.shape, rep),
                pl.BlockSpec(b1.shape, rep),
                pl.BlockSpec(w2.shape, rep),
                pl.BlockSpec(b2.shape, rep),
                pl.BlockSpec(w3.shape, rep),
                pl.BlockSpec(b3.shape, rep),
                pl.BlockSpec(rowsel.shape, rep),
                pl.BlockSpec(rowsel_t.shape, rep),
                pl.BlockSpec(gsel.shape, rep),
                pl.BlockSpec(gsel_t.shape, rep),
            ],
            out_specs=pl.BlockSpec((b_blk * n, 4), lambda i: (i, 0)),
        ),
        compiler_params=pltpu.CompilerParams(dimension_semantics=("parallel",)),
    )(det_tok, wct, bc, gamma, beta, w1, b1, w2, b2, w3, b3,
      rowsel, rowsel_t, gsel, gsel_t)

    return out_flat.reshape(batch, n, 4)


def _reference(det, params, num_groups, eps=1e-5):
    """Pure-JAX reproduction of the PyTorch forward for validation."""
    wc, bc, gamma, beta, w1, b1, w2, b2, w3, b3 = params
    y = jnp.einsum('oc,bcn->bon', wc, det) + bc.reshape(1, -1, 1)
    batch, c, n = y.shape
    yg = y.reshape(batch, num_groups, c // num_groups, n)
    mean = yg.mean(axis=(2, 3), keepdims=True)
    var = ((yg - mean) ** 2).mean(axis=(2, 3), keepdims=True)
    yn = ((yg - mean) / jnp.sqrt(var + eps)).reshape(batch, c, n)
    yn = yn * gamma.reshape(1, -1, 1) + beta.reshape(1, -1, 1)
    x = jnp.transpose(yn, (0, 2, 1))
    h = jax.nn.relu(x @ w1 + b1)
    h = jax.nn.relu(h @ w2 + b2)
    h = h @ w3 + b3
    return jax.nn.sigmoid(h)


if __name__ == "__main__":
    key = jax.random.PRNGKey(0)
    batch = 2
    grounding_output_dim = 32      # backbone channel dim (C_in)
    head_reduced_dim = 32          # head channel dim (C_out / MLP width)
    num_groups = 8                 # grouped_norm_channel (must divide head_reduced_dim)
    det_token_num = 8

    ks = jax.random.split(key, 6)

    # Conv2d(kernel_size=1): xavier_uniform weight, zero bias (as in the module __init__).
    bound = (6.0 / (grounding_output_dim + head_reduced_dim)) ** 0.5
    wc = jax.random.uniform(ks[0], (head_reduced_dim, grounding_output_dim),
                            jnp.float32, -bound, bound)
    bc = jnp.zeros((1, head_reduced_dim), jnp.float32)
    # GroupNorm affine params (PyTorch defaults: weight=1, bias=0).
    gamma = jnp.ones((1, head_reduced_dim), jnp.float32)
    beta = jnp.zeros((1, head_reduced_dim), jnp.float32)

    def linear_init(k, fan_in, fan_out):
        # Deterministic synthetic init (PyTorch-Linear-like uniform bounds).
        # Weights are stored as (in, out) so the kernel computes x @ W directly
        # (PyTorch stores (out, in) and computes x @ W^T — same math).
        kw, kb = jax.random.split(k)
        lim = (1.0 / fan_in) ** 0.5
        w = jax.random.uniform(kw, (fan_in, fan_out), jnp.float32, -lim, lim)
        b = jax.random.uniform(kb, (1, fan_out), jnp.float32, -lim, lim)
        return w, b

    w1, b1 = linear_init(ks[1], head_reduced_dim, head_reduced_dim)
    w2, b2 = linear_init(ks[2], head_reduced_dim, head_reduced_dim)
    w3, b3 = linear_init(ks[3], head_reduced_dim, 4)

    det = jax.random.normal(ks[4], (batch, grounding_output_dim, det_token_num), jnp.float32)

    params = (wc, bc, gamma, beta, w1, b1, w2, b2, w3, b3)

    out = direct_window_reg_grounding_header(det, params, num_groups=num_groups)
    out = jax.block_until_ready(out)

    ref = _reference(det, params, num_groups)
    assert out.shape == (batch, det_token_num, 4), out.shape
    assert bool(jnp.all(jnp.isfinite(out)))
    assert bool(jnp.allclose(out, ref, atol=2e-5, rtol=2e-5)), \
        float(jnp.max(jnp.abs(out - ref)))
    print("KERNEL_OK")
</pallas_src>

<mosaic_0001>
module attributes {stable_mosaic.version = 11 : i64} {
  func.func @_grounding_head_kernel(%arg0: i32, %arg1: memref<16x32xf32, #tpu.memory_space<vmem>>, %arg2: memref<32x32xf32, #tpu.memory_space<vmem>>, %arg3: memref<1x32xf32, #tpu.memory_space<vmem>>, %arg4: memref<1x32xf32, #tpu.memory_space<vmem>>, %arg5: memref<1x32xf32, #tpu.memory_space<vmem>>, %arg6: memref<32x32xf32, #tpu.memory_space<vmem>>, %arg7: memref<1x32xf32, #tpu.memory_space<vmem>>, %arg8: memref<32x32xf32, #tpu.memory_space<vmem>>, %arg9: memref<1x32xf32, #tpu.memory_space<vmem>>, %arg10: memref<32x4xf32, #tpu.memory_space<vmem>>, %arg11: memref<1x4xf32, #tpu.memory_space<vmem>>, %arg12: memref<2x16xf32, #tpu.memory_space<vmem>>, %arg13: memref<16x2xf32, #tpu.memory_space<vmem>>, %arg14: memref<32x8xf32, #tpu.memory_space<vmem>>, %arg15: memref<8x32xf32, #tpu.memory_space<vmem>>, %arg16: memref<16x4xf32, #tpu.memory_space<vmem>>) attributes {dimension_semantics = [#tpu.dimension_semantics<parallel>], iteration_bounds = array<i64: 1>, scalar_prefetch = 0 : i64, scratch_operands = 0 : i64, tpu.core_type = #tpu.core_type<tc>, window_params = [{transform_indices = @transform_0, window_bounds = array<i64: 16, 32>}, {pipeline_mode = #tpu.pipeline_mode<synchronous>, transform_indices = @transform_1, window_bounds = array<i64: 32, 32>}, {pipeline_mode = #tpu.pipeline_mode<synchronous>, transform_indices = @transform_2, window_bounds = array<i64: 1, 32>}, {pipeline_mode = #tpu.pipeline_mode<synchronous>, transform_indices = @transform_3, window_bounds = array<i64: 1, 32>}, {pipeline_mode = #tpu.pipeline_mode<synchronous>, transform_indices = @transform_4, window_bounds = array<i64: 1, 32>}, {pipeline_mode = #tpu.pipeline_mode<synchronous>, transform_indices = @transform_5, window_bounds = array<i64: 32, 32>}, {pipeline_mode = #tpu.pipeline_mode<synchronous>, transform_indices = @transform_6, window_bounds = array<i64: 1, 32>}, {pipeline_mode = #tpu.pipeline_mode<synchronous>, transform_indices = @transform_7, window_bounds = array<i64: 32, 32>}, {pipeline_mode = #tpu.pipeline_mode<synchronous>, transform_indices = @transform_8, window_bounds = array<i64: 1, 32>}, {pipeline_mode = #tpu.pipeline_mode<synchronous>, transform_indices = @transform_9, window_bounds = array<i64: 32, 4>}, {pipeline_mode = #tpu.pipeline_mode<synchronous>, transform_indices = @transform_10, window_bounds = array<i64: 1, 4>}, {pipeline_mode = #tpu.pipeline_mode<synchronous>, transform_indices = @transform_11, window_bounds = array<i64: 2, 16>}, {pipeline_mode = #tpu.pipeline_mode<synchronous>, transform_indices = @transform_12, window_bounds = array<i64: 16, 2>}, {pipeline_mode = #tpu.pipeline_mode<synchronous>, transform_indices = @transform_13, window_bounds = array<i64: 32, 8>}, {pipeline_mode = #tpu.pipeline_mode<synchronous>, transform_indices = @transform_14, window_bounds = array<i64: 8, 32>}, {transform_indices = @transform_15, window_bounds = array<i64: 16, 4>}]} {
    %c0 = arith.constant 0 : index
    %c0_0 = arith.constant 0 : index
    %0 = vector.load %arg1[%c0, %c0_0] : memref<16x32xf32, #tpu.memory_space<vmem>>, vector<16x32xf32>
    %c0_1 = arith.constant 0 : index
    %c0_2 = arith.constant 0 : index
    %1 = vector.load %arg2[%c0_1, %c0_2] : memref<32x32xf32, #tpu.memory_space<vmem>>, vector<32x32xf32>
    %cst = arith.constant dense<0.000000e+00> : vector<16x32xf32>
    %2 = tpu.matmul %0, %1, %cst {dimension_numbers = #tpu.dot_dimension_numbers<[1], [0], [0], [1], [0, 0, 1, 1], [], []>} : vector<16x32xf32>, vector<32x32xf32>, vector<16x32xf32> -> vector<16x32xf32>
    %c0_3 = arith.constant 0 : index
    %c0_4 = arith.constant 0 : index
    %3 = vector.load %arg3[%c0_3, %c0_4] : memref<1x32xf32, #tpu.memory_space<vmem>>, vector<1x32xf32>
    %4 = vector.broadcast %3 : vector<1x32xf32> to vector<16x32xf32>
    %5 = arith.addf %2, %4 : vector<16x32xf32>
    %c0_5 = arith.constant 0 : index
    %c0_6 = arith.constant 0 : index
    %6 = vector.load %arg12[%c0_5, %c0_6] : memref<2x16xf32, #tpu.memory_space<vmem>>, vector<2x16xf32>
    %c0_7 = arith.constant 0 : index
    %c0_8 = arith.constant 0 : index
    %7 = vector.load %arg14[%c0_7, %c0_8] : memref<32x8xf32, #tpu.memory_space<vmem>>, vector<32x8xf32>
    %cst_9 = arith.constant dense<0.000000e+00> : vector<2x32xf32>
    %8 = tpu.matmul %6, %5, %cst_9 {dimension_numbers = #tpu.dot_dimension_numbers<[1], [0], [0], [1], [0, 0, 1, 1], [], []>} : vector<2x16xf32>, vector<16x32xf32>, vector<2x32xf32> -> vector<2x32xf32>
    %9 = arith.mulf %5, %5 : vector<16x32xf32>
    %cst_10 = arith.constant dense<0.000000e+00> : vector<2x32xf32>
    %10 = tpu.matmul %6, %9, %cst_10 {dimension_numbers = #tpu.dot_dimension_numbers<[1], [0], [0], [1], [0, 0, 1, 1], [], []>} : vector<2x16xf32>, vector<16x32xf32>, vector<2x32xf32> -> vector<2x32xf32>
    %cst_11 = arith.constant dense<0.000000e+00> : vector<2x8xf32>
    %11 = tpu.matmul %8, %7, %cst_11 {dimension_numbers = #tpu.dot_dimension_numbers<[1], [0], [0], [1], [0, 0, 1, 1], [], []>} : vector<2x32xf32>, vector<32x8xf32>, vector<2x8xf32> -> vector<2x8xf32>
    %cst_12 = arith.constant dense<0.000000e+00> : vector<2x8xf32>
    %12 = tpu.matmul %10, %7, %cst_12 {dimension_numbers = #tpu.dot_dimension_numbers<[1], [0], [0], [1], [0, 0, 1, 1], [], []>} : vector<2x32xf32>, vector<32x8xf32>, vector<2x8xf32> -> vector<2x8xf32>
    %cst_13 = arith.constant 3.200000e+01 : f32
    %13 = vector.broadcast %cst_13 : f32 to vector<2x8xf32>
    %14 = arith.divf %11, %13 : vector<2x8xf32>
    %cst_14 = arith.constant 3.200000e+01 : f32
    %15 = vector.broadcast %cst_14 : f32 to vector<2x8xf32>
    %16 = arith.divf %12, %15 : vector<2x8xf32>
    %17 = arith.mulf %14, %14 : vector<2x8xf32>
    %18 = arith.subf %16, %17 : vector<2x8xf32>
    %cst_15 = arith.constant 0.000000e+00 : f32
    %19 = vector.broadcast %cst_15 : f32 to vector<2x8xf32>
    %20 = arith.maximumf %18, %19 : vector<2x8xf32>
    %cst_16 = arith.constant 9.99999974E-6 : f32
    %21 = vector.broadcast %cst_16 : f32 to vector<2x8xf32>
    %22 = arith.addf %20, %21 : vector<2x8xf32>
    %23 = math.rsqrt %22 : vector<2x8xf32>
    %c0_17 = arith.constant 0 : index
    %c0_18 = arith.constant 0 : index
    %24 = vector.load %arg15[%c0_17, %c0_18] : memref<8x32xf32, #tpu.memory_space<vmem>>, vector<8x32xf32>
    %cst_19 = arith.constant dense<0.000000e+00> : vector<2x32xf32>
    %25 = tpu.matmul %23, %24, %cst_19 {dimension_numbers = #tpu.dot_dimension_numbers<[1], [0], [0], [1], [0, 0, 1, 1], [], []>} : vector<2x8xf32>, vector<8x32xf32>, vector<2x32xf32> -> vector<2x32xf32>
    %cst_20 = arith.constant dense<0.000000e+00> : vector<2x32xf32>
    %26 = tpu.matmul %14, %24, %cst_20 {dimension_numbers = #tpu.dot_dimension_numbers<[1], [0], [0], [1], [0, 0, 1, 1], [], []>} : vector<2x8xf32>, vector<8x32xf32>, vector<2x32xf32> -> vector<2x32xf32>
    %c0_21 = arith.constant 0 : index
    %c0_22 = arith.constant 0 : index
    %27 = vector.load %arg4[%c0_21, %c0_22] : memref<1x32xf32, #tpu.memory_space<vmem>>, vector<1x32xf32>
    %28 = vector.broadcast %27 : vector<1x32xf32> to vector<2x32xf32>
    %29 = arith.mulf %25, %28 : vector<2x32xf32>
    %c0_23 = arith.constant 0 : index
    %c0_24 = arith.constant 0 : index
    %30 = vector.load %arg5[%c0_23, %c0_24] : memref<1x32xf32, #tpu.memory_space<vmem>>, vector<1x32xf32>
    %31 = arith.mulf %26, %29 : vector<2x32xf32>
    %32 = vector.broadcast %30 : vector<1x32xf32> to vector<2x32xf32>
    %33 = arith.subf %32, %31 : vector<2x32xf32>
    %c0_25 = arith.constant 0 : index
    %c0_26 = arith.constant 0 : index
    %34 = vector.load %arg13[%c0_25, %c0_26] : memref<16x2xf32, #tpu.memory_space<vmem>>, vector<16x2xf32>
    %cst_27 = arith.constant dense<0.000000e+00> : vector<16x32xf32>
    %35 = tpu.matmul %34, %29, %cst_27 {dimension_numbers = #tpu.dot_dimension_numbers<[1], [0], [0], [1], [0, 0, 1, 1], [], []>} : vector<16x2xf32>, vector<2x32xf32>, vector<16x32xf32> -> vector<16x32xf32>
    %cst_28 = arith.constant dense<0.000000e+00> : vector<16x32xf32>
    %36 = tpu.matmul %34, %33, %cst_28 {dimension_numbers = #tpu.dot_dimension_numbers<[1], [0], [0], [1], [0, 0, 1, 1], [], []>} : vector<16x2xf32>, vector<2x32xf32>, vector<16x32xf32> -> vector<16x32xf32>
    %37 = arith.mulf %5, %35 : vector<16x32xf32>
    %38 = arith.addf %37, %36 : vector<16x32xf32>
    %c0_29 = arith.constant 0 : index
    %c0_30 = arith.constant 0 : index
    %39 = vector.load %arg6[%c0_29, %c0_30] : memref<32x32xf32, #tpu.memory_space<vmem>>, vector<32x32xf32>
    %cst_31 = arith.constant dense<0.000000e+00> : vector<16x32xf32>
    %40 = tpu.matmul %38, %39, %cst_31 {dimension_numbers = #tpu.dot_dimension_numbers<[1], [0], [0], [1], [0, 0, 1, 1], [], []>} : vector<16x32xf32>, vector<32x32xf32>, vector<16x32xf32> -> vector<16x32xf32>
    %c0_32 = arith.constant 0 : index
    %c0_33 = arith.constant 0 : index
    %41 = vector.load %arg7[%c0_32, %c0_33] : memref<1x32xf32, #tpu.memory_space<vmem>>, vector<1x32xf32>
    %42 = vector.broadcast %41 : vector<1x32xf32> to vector<16x32xf32>
    %43 = arith.addf %40, %42 : vector<16x32xf32>
    %cst_34 = arith.constant 0.000000e+00 : f32
    %44 = vector.broadcast %cst_34 : f32 to vector<16x32xf32>
    %45 = arith.maximumf %43, %44 : vector<16x32xf32>
    %c0_35 = arith.constant 0 : index
    %c0_36 = arith.constant 0 : index
    %46 = vector.load %arg8[%c0_35, %c0_36] : memref<32x32xf32, #tpu.memory_space<vmem>>, vector<32x32xf32>
    %cst_37 = arith.constant dense<0.000000e+00> : vector<16x32xf32>
    %47 = tpu.matmul %45, %46, %cst_37 {dimension_numbers = #tpu.dot_dimension_numbers<[1], [0], [0], [1], [0, 0, 1, 1], [], []>} : vector<16x32xf32>, vector<32x32xf32>, vector<16x32xf32> -> vector<16x32xf32>
    %c0_38 = arith.constant 0 : index
    %c0_39 = arith.constant 0 : index
    %48 = vector.load %arg9[%c0_38, %c0_39] : memref<1x32xf32, #tpu.memory_space<vmem>>, vector<1x32xf32>
    %49 = vector.broadcast %48 : vector<1x32xf32> to vector<16x32xf32>
    %50 = arith.addf %47, %49 : vector<16x32xf32>
    %cst_40 = arith.constant 0.000000e+00 : f32
    %51 = vector.broadcast %cst_40 : f32 to vector<16x32xf32>
    %52 = arith.maximumf %50, %51 : vector<16x32xf32>
    %c0_41 = arith.constant 0 : index
    %c0_42 = arith.constant 0 : index
    %53 = vector.load %arg10[%c0_41, %c0_42] : memref<32x4xf32, #tpu.memory_space<vmem>>, vector<32x4xf32>
    %cst_43 = arith.constant dense<0.000000e+00> : vector<16x4xf32>
    %54 = tpu.matmul %52, %53, %cst_43 {dimension_numbers = #tpu.dot_dimension_numbers<[1], [0], [0], [1], [0, 0, 1, 1], [], []>} : vector<16x32xf32>, vector<32x4xf32>, vector<16x4xf32> -> vector<16x4xf32>
    %c0_44 = arith.constant 0 : index
    %c0_45 = arith.constant 0 : index
    %55 = vector.load %arg11[%c0_44, %c0_45] : memref<1x4xf32, #tpu.memory_space<vmem>>, vector<1x4xf32>
    %56 = vector.broadcast %55 : vector<1x4xf32> to vector<16x4xf32>
    %57 = arith.addf %54, %56 : vector<16x4xf32>
    %58 = arith.negf %57 : vector<16x4xf32>
    %59 = math.exp %58 : vector<16x4xf32>
    %cst_46 = arith.constant 1.000000e+00 : f32
    %60 = vector.broadcast %cst_46 : f32 to vector<16x4xf32>
    %61 = arith.addf %60, %59 : vector<16x4xf32>
    %62 = arith.divf %60, %61 : vector<16x4xf32>
    %c0_47 = arith.constant 0 : index
    %c0_48 = arith.constant 0 : index
    %63 = vector.load %arg16[%c0_47, %c0_48] : memref<16x4xf32, #tpu.memory_space<vmem>>, vector<16x4xf32>
    tpu.vector_store %arg16[%c0_47, %c0_48], %62 {strides = array<i32>} : memref<16x4xf32, #tpu.memory_space<vmem>>, vector<16x4xf32>,
    return
  }
  func.func @transform_0(%arg0: i32) -> (i32, i32) {
    %c0_i32 = arith.constant 0 : i32
    %c0_i32_0 = arith.constant 0 : i32
    return %arg0, %c0_i32 : i32, i32
  }
  func.func @transform_1(%arg0: i32) -> (i32, i32) {
    %c0_i32 = arith.constant 0 : i32
    %c0_i32_0 = arith.constant 0 : i32
    %c0_i32_1 = arith.constant 0 : i32
    return %c0_i32, %c0_i32_0 : i32, i32
  }
  func.func @transform_2(%arg0: i32) -> (i32, i32) {
    %c0_i32 = arith.constant 0 : i32
    %c0_i32_0 = arith.constant 0 : i32
    %c0_i32_1 = arith.constant 0 : i32
    return %c0_i32, %c0_i32_0 : i32, i32
  }
  func.func @transform_3(%arg0: i32) -> (i32, i32) {
    %c0_i32 = arith.constant 0 : i32
    %c0_i32_0 = arith.constant 0 : i32
    %c0_i32_1 = arith.constant 0 : i32
    return %c0_i32, %c0_i32_0 : i32, i32
  }
  func.func @transform_4(%arg0: i32) -> (i32, i32) {
    %c0_i32 = arith.constant 0 : i32
    %c0_i32_0 = arith.constant 0 : i32
    %c0_i32_1 = arith.constant 0 : i32
    return %c0_i32, %c0_i32_0 : i32, i32
  }
  func.func @transform_5(%arg0: i32) -> (i32, i32) {
    %c0_i32 = arith.constant 0 : i32
    %c0_i32_0 = arith.constant 0 : i32
    %c0_i32_1 = arith.constant 0 : i32
    return %c0_i32, %c0_i32_0 : i32, i32
  }
  func.func @transform_6(%arg0: i32) -> (i32, i32) {
    %c0_i32 = arith.constant 0 : i32
    %c0_i32_0 = arith.constant 0 : i32
    %c0_i32_1 = arith.constant 0 : i32
    return %c0_i32, %c0_i32_0 : i32, i32
  }
  func.func @transform_7(%arg0: i32) -> (i32, i32) {
    %c0_i32 = arith.constant 0 : i32
    %c0_i32_0 = arith.constant 0 : i32
    %c0_i32_1 = arith.constant 0 : i32
    return %c0_i32, %c0_i32_0 : i32, i32
  }
  func.func @transform_8(%arg0: i32) -> (i32, i32) {
    %c0_i32 = arith.constant 0 : i32
    %c0_i32_0 = arith.constant 0 : i32
    %c0_i32_1 = arith.constant 0 : i32
    return %c0_i32, %c0_i32_0 : i32, i32
  }
  func.func @transform_9(%arg0: i32) -> (i32, i32) {
    %c0_i32 = arith.constant 0 : i32
    %c0_i32_0 = arith.constant 0 : i32
    %c0_i32_1 = arith.constant 0 : i32
    return %c0_i32, %c0_i32_0 : i32, i32
  }
  func.func @transform_10(%arg0: i32) -> (i32, i32) {
    %c0_i32 = arith.constant 0 : i32
    %c0_i32_0 = arith.constant 0 : i32
    %c0_i32_1 = arith.constant 0 : i32
    return %c0_i32, %c0_i32_0 : i32, i32
  }
  func.func @transform_11(%arg0: i32) -> (i32, i32) {
    %c0_i32 = arith.constant 0 : i32
    %c0_i32_0 = arith.constant 0 : i32
    %c0_i32_1 = arith.constant 0 : i32
    return %c0_i32, %c0_i32_0 : i32, i32
  }
  func.func @transform_12(%arg0: i32) -> (i32, i32) {
    %c0_i32 = arith.constant 0 : i32
    %c0_i32_0 = arith.constant 0 : i32
    %c0_i32_1 = arith.constant 0 : i32
    return %c0_i32, %c0_i32_0 : i32, i32
  }
  func.func @transform_13(%arg0: i32) -> (i32, i32) {
    %c0_i32 = arith.constant 0 : i32
    %c0_i32_0 = arith.constant 0 : i32
    %c0_i32_1 = arith.constant 0 : i32
    return %c0_i32, %c0_i32_0 : i32, i32
  }
  func.func @transform_14(%arg0: i32) -> (i32, i32) {
    %c0_i32 = arith.constant 0 : i32
    %c0_i32_0 = arith.constant 0 : i32
    %c0_i32_1 = arith.constant 0 : i32
    return %c0_i32, %c0_i32_0 : i32, i32
  }
  func.func @transform_15(%arg0: i32) -> (i32, i32) {
    %c0_i32 = arith.constant 0 : i32
    %c0_i32_0 = arith.constant 0 : i32
    return %arg0, %c0_i32 : i32, i32
  }
}

</mosaic_0001>

<llo_original>
// kernel: tpu_custom_call.1
$region0: #{tpu_custom_call.1}
  #allocation0 [shape = 'u32[]', space=smem, size = 0x4, offset = 0x4, fixed_abs, tag = 'smem constant byte address 0x4 - core index']
  #allocation1 [shape = 'u32[144,128]{1,0:T(1,128)}', space=vmem, size = 0x12000, scoped, tag = 'internal scratch']
  %s0 = inlined_call_operand.hbm [shape: f32[16,32], index: 0, kind: input, shape index: {}]
  %s1 = inlined_call_operand.vmem [shape: f32[32,32], index: 1, kind: input, shape index: {}]
  %s2 = inlined_call_operand.hbm [shape: f32[1,32], index: 2, kind: input, shape index: {}]
  %s3 = inlined_call_operand.hbm [shape: f32[1,32], index: 3, kind: input, shape index: {}]
  %s4 = inlined_call_operand.hbm [shape: f32[1,32], index: 4, kind: input, shape index: {}]
  %s5 = inlined_call_operand.vmem [shape: f32[32,32], index: 5, kind: input, shape index: {}]
  %s6 = inlined_call_operand.hbm [shape: f32[1,32], index: 6, kind: input, shape index: {}]
  %s7 = inlined_call_operand.vmem [shape: f32[32,32], index: 7, kind: input, shape index: {}]
  %s8 = inlined_call_operand.hbm [shape: f32[1,32], index: 8, kind: input, shape index: {}]
  %s9 = inlined_call_operand.vmem [shape: f32[32,4], index: 9, kind: input, shape index: {}]
  %s10 = inlined_call_operand.hbm [shape: f32[1,4], index: 10, kind: input, shape index: {}]
  %s11 = inlined_call_operand.hbm [shape: f32[2,16], index: 11, kind: input, shape index: {}]
  %s12 = inlined_call_operand.vmem [shape: f32[16,2], index: 12, kind: input, shape index: {}]
  %s13 = inlined_call_operand.vmem [shape: f32[32,8], index: 13, kind: input, shape index: {}]
  %s14 = inlined_call_operand.vmem [shape: f32[8,32], index: 14, kind: input, shape index: {}]
  %s15 = inlined_call_operand.vmem [shape: f32[16,4], index: 15, kind: output, shape index: {}]
  %s16 = sld [smem:[#allocation0]]
  $region102: #{tpu_custom_call.1} parent=0
    _
  %s18 = ssub.s32 1, %s16
  %s19 = scalar_select 0, %s18, %s16
  $region1: #{tpu_custom_call.1} parent=0
    #allocation2 [shape = 'u8[8192]{0}', space=vmem, size = 0x2000, scoped, tag = 'input window, operand 0, single buffered']
    #allocation3 [shape = 's32[1]{0}', space=sflag, size = 0x4, scoped, tag = 'scoped memory for tpu_custom_call.1']
    #allocation4 [shape = 'u8[512]{0}', space=vmem, size = 0x400, scoped, tag = 'input window, operand 2, single buffered']
    #allocation5 [shape = 's32[1]{0}', space=sflag, size = 0x4, scoped, tag = 'scoped memory for tpu_custom_call.1']
    #allocation6 [shape = 'u8[512]{0}', space=vmem, size = 0x400, scoped, tag = 'input window, operand 3, single buffered']
    #allocation7 [shape = 'u8[512]{0}', space=vmem, size = 0x400, scoped, tag = 'input window, operand 4, single buffered']
    #allocation8 [shape = 's32[1]{0}', space=sflag, size = 0x4, scoped, tag = 'scoped memory for tpu_custom_call.1']
    #allocation9 [shape = 'u8[512]{0}', space=vmem, size = 0x400, scoped, tag = 'input window, operand 6, single buffered']
    #allocation10 [shape = 'u8[512]{0}', space=vmem, size = 0x400, scoped, tag = 'input window, operand 8, single buffered']
    #allocation11 [shape = 's32[1]{0}', space=sflag, size = 0x4, scoped, tag = 'scoped memory for tpu_custom_call.1']
    #allocation12 [shape = 'u8[512]{0}', space=vmem, size = 0x400, scoped, tag = 'input window, operand 10, single buffered']
    #allocation13 [shape = 'u8[1024]{0}', space=vmem, size = 0x400, scoped, tag = 'input window, operand 11, single buffered']
    #allocation14 [shape = 's32[1]{0}', space=sflag, size = 0x4, scoped, tag = 'scoped memory for tpu_custom_call.1']
    %20 = vsyncpa [#allocation3], 0
    %21 = vsyncpa [#allocation5], 0
    %22 = vsyncpa [#allocation8], 0
    %23 = vsyncpa [#allocation11], 0
    %24 = vsyncpa [#allocation14], 0
    // Predicated region
    $region2: #{tpu_custom_call.1} parent=1 // pred_check
      _
    $region3: #{tpu_custom_call.1} parent=1 // pred_check_branch
      %26 = sbr.rel (0) target = $region5
    $region4: #{tpu_custom_call.1} parent=1 // pred_region
      %s28 = ssub.s32 256, 256
      %29 = vsyncadd [#allocation3], %s28
      %s30 = sshll.u32 [#allocation2], 4
      %s31 = int_to_ptr.vmem [resolvable:$true] %s30
      %36 = dma.hbm_to_vmem [thread:$0]  %s0, 256, %s31, [#allocation3], 128, 128, 8
    $region5: #{tpu_custom_call.1} parent=1 // pred_fallthru
      _
    // Predicated region
    $region6: #{tpu_custom_call.1} parent=1 // pred_check
      _
    $region7: #{tpu_custom_call.1} parent=1 // pred_check_branch
      %38 = sbr.rel (0) target = $region9
    $region8: #{tpu_custom_call.1} parent=1 // pred_region
      _
    $region9: #{tpu_custom_call.1} parent=1 // pred_fallthru
      _
    // Predicated region
    $region10: #{tpu_custom_call.1} parent=1 // pred_check
      _
    $region11: #{tpu_custom_call.1} parent=1 // pred_check_branch
      %40 = sbr.rel (0) target = $region13
    $region12: #{tpu_custom_call.1} parent=1 // pred_region
      %s42 = ssub.s32 16, 16
      %43 = vsyncadd [#allocation5], %s42
      %s45 = sshll.u32 [#allocation4], 4
      %s46 = int_to_ptr.vmem [resolvable:$true] %s45
      %48 = dma.hbm_to_vmem [thread:$0]  %s2, 16, %s46, [#allocation5]
    $region13: #{tpu_custom_call.1} parent=1 // pred_fallthru
      _
    // Predicated region
    $region14: #{tpu_custom_call.1} parent=1 // pred_check
      _
    $region15: #{tpu_custom_call.1} parent=1 // pred_check_branch
      %50 = sbr.rel (0) target = $region17
    $region16: #{tpu_custom_call.1} parent=1 // pred_region
      %s52 = ssub.s32 16, 16
      %53 = vsyncadd [#allocation5], %s52
      %s55 = sshll.u32 [#allocation6], 4
      %s56 = int_to_ptr.vmem [resolvable:$true] %s55
      %58 = dma.hbm_to_vmem [thread:$0]  %s3, 16, %s56, [#allocation5]
    $region17: #{tpu_custom_call.1} parent=1 // pred_fallthru
      _
    // Predicated region
    $region18: #{tpu_custom_call.1} parent=1 // pred_check
      _
    $region19: #{tpu_custom_call.1} parent=1 // pred_check_branch
      %60 = sbr.rel (0) target = $region21
    $region20: #{tpu_custom_call.1} parent=1 // pred_region
      %s62 = ssub.s32 16, 16
      %63 = vsyncadd [#allocation8], %s62
      %s65 = sshll.u32 [#allocation7], 4
      %s66 = int_to_ptr.vmem [resolvable:$true] %s65
      %68 = dma.hbm_to_vmem [thread:$0]  %s4, 16, %s66, [#allocation8]
    $region21: #{tpu_custom_call.1} parent=1 // pred_fallthru
      _
    // Predicated region
    $region22: #{tpu_custom_call.1} parent=1 // pred_check
      _
    $region23: #{tpu_custom_call.1} parent=1 // pred_check_branch
      %70 = sbr.rel (0) target = $region25
    $region24: #{tpu_custom_call.1} parent=1 // pred_region
      _
    $region25: #{tpu_custom_call.1} parent=1 // pred_fallthru
      _
    // Predicated region
    $region26: #{tpu_custom_call.1} parent=1 // pred_check
      _
    $region27: #{tpu_custom_call.1} parent=1 // pred_check_branch
      %72 = sbr.rel (0) target = $region29
    $region28: #{tpu_custom_call.1} parent=1 // pred_region
      %s74 = ssub.s32 16, 16
      %75 = vsyncadd [#allocation8], %s74
      %s77 = sshll.u32 [#allocation9], 4
      %s78 = int_to_ptr.vmem [resolvable:$true] %s77
      %80 = dma.hbm_to_vmem [thread:$0]  %s6, 16, %s78, [#allocation8]
    $region29: #{tpu_custom_call.1} parent=1 // pred_fallthru
      _
    // Predicated region
    $region30: #{tpu_custom_call.1} parent=1 // pred_check
      _
    $region31: #{tpu_custom_call.1} parent=1 // pred_check_branch
      %82 = sbr.rel (0) target = $region33
    $region32: #{tpu_custom_call.1} parent=1 // pred_region
      _
    $region33: #{tpu_custom_call.1} parent=1 // pred_fallthru
      _
    // Predicated region
    $region34: #{tpu_custom_call.1} parent=1 // pred_check
      _
    $region35: #{tpu_custom_call.1} parent=1 // pred_check_branch
      %84 = sbr.rel (0) target = $region37
    $region36: #{tpu_custom_call.1} parent=1 // pred_region
      %s86 = ssub.s32 16, 16
      %87 = vsyncadd [#allocation11], %s86
      %s89 = sshll.u32 [#allocation10], 4
      %s90 = int_to_ptr.vmem [resolvable:$true] %s89
      %92 = dma.hbm_to_vmem [thread:$0]  %s8, 16, %s90, [#allocation11]
    $region37: #{tpu_custom_call.1} parent=1 // pred_fallthru
      _
    // Predicated region
    $region38: #{tpu_custom_call.1} parent=1 // pred_check
      _
    $region39: #{tpu_custom_call.1} parent=1 // pred_check_branch
      %94 = sbr.rel (0) target = $region41
    $region40: #{tpu_custom_call.1} parent=1 // pred_region
      _
    $region41: #{tpu_custom_call.1} parent=1 // pred_fallthru
      _
    // Predicated region
    $region42: #{tpu_custom_call.1} parent=1 // pred_check
      _
    $region43: #{tpu_custom_call.1} parent=1 // pred_check_branch
      %96 = sbr.rel (0) target = $region45
    $region44: #{tpu_custom_call.1} parent=1 // pred_region
      %s98 = ssub.s32 16, 16
      %99 = vsyncadd [#allocation11], %s98
      %s101 = sshll.u32 [#allocation12], 4
      %s102 = int_to_ptr.vmem [resolvable:$true] %s101
      %104 = dma.hbm_to_vmem [thread:$0]  %s10, 16, %s102, [#allocation11]
    $region45: #{tpu_custom_call.1} parent=1 // pred_fallthru
      _
    // Predicated region
    $region46: #{tpu_custom_call.1} parent=1 // pred_check
      _
    $region47: #{tpu_custom_call.1} parent=1 // pred_check_branch
      %106 = sbr.rel (0) target = $region49
    $region48: #{tpu_custom_call.1} parent=1 // pred_region
      %s108 = ssub.s32 32, 32
      %109 = vsyncadd [#allocation14], %s108
      %s111 = sshll.u32 [#allocation13], 4
      %s112 = int_to_ptr.vmem [resolvable:$true] %s111
      %114 = dma.hbm_to_vmem [thread:$0]  %s11, 32, %s112, [#allocation14]
    $region49: #{tpu_custom_call.1} parent=1 // pred_fallthru
      _
    // Predicated region
    $region50: #{tpu_custom_call.1} parent=1 // pred_check
      _
    $region51: #{tpu_custom_call.1} parent=1 // pred_check_branch
      %116 = sbr.rel (0) target = $region53
    $region52: #{tpu_custom_call.1} parent=1 // pred_region
      _
    $region53: #{tpu_custom_call.1} parent=1 // pred_fallthru
      _
    // Predicated region
    $region54: #{tpu_custom_call.1} parent=1 // pred_check
      _
    $region55: #{tpu_custom_call.1} parent=1 // pred_check_branch
      %118 = sbr.rel (0) target = $region57
    $region56: #{tpu_custom_call.1} parent=1 // pred_region
      _
    $region57: #{tpu_custom_call.1} parent=1 // pred_fallthru
      _
    // Predicated region
    $region58: #{tpu_custom_call.1} parent=1 // pred_check
      _
    $region59: #{tpu_custom_call.1} parent=1 // pred_check_branch
      %120 = sbr.rel (0) target = $region61
    $region60: #{tpu_custom_call.1} parent=1 // pred_region
      _
    $region61: #{tpu_custom_call.1} parent=1 // pred_fallthru
      _
    // Predicated region
    $region62: #{tpu_custom_call.1} parent=1 // pred_check
      _
    $region63: #{tpu_custom_call.1} parent=1 // pred_check_branch
      %122 = sbr.rel (0) target = $region65
    $region64: #{tpu_custom_call.1} parent=1 // pred_region
      %123 = dma.done [#allocation3], 256
    $region65: #{tpu_custom_call.1} parent=1 // pred_fallthru
      _
    // Predicated region
    $region66: #{tpu_custom_call.1} parent=1 // pred_check
      _
    $region67: #{tpu_custom_call.1} parent=1 // pred_check_branch
      %125 = sbr.rel (0) target = $region69
    $region68: #{tpu_custom_call.1} parent=1 // pred_region
      %126 = dma.done [#allocation5], 16
    $region69: #{tpu_custom_call.1} parent=1 // pred_fallthru
      _
    // Predicated region
    $region70: #{tpu_custom_call.1} parent=1 // pred_check
      _
    $region71: #{tpu_custom_call.1} parent=1 // pred_check_branch
      %128 = sbr.rel (0) target = $region73
    $region72: #{tpu_custom_call.1} parent=1 // pred_region
      %129 = dma.done [#allocation5], 16
    $region73: #{tpu_custom_call.1} parent=1 // pred_fallthru
      _
    // Predicated region
    $region74: #{tpu_custom_call.1} parent=1 // pred_check
      _
    $region75: #{tpu_custom_call.1} parent=1 // pred_check_branch
      %131 = sbr.rel (0) target = $region77
    $region76: #{tpu_custom_call.1} parent=1 // pred_region
      %132 = dma.done [#allocation8], 16
    $region77: #{tpu_custom_call.1} parent=1 // pred_fallthru
      _
    // Predicated region
    $region78: #{tpu_custom_call.1} parent=1 // pred_check
      _
    $region79: #{tpu_custom_call.1} parent=1 // pred_check_branch
      %134 = sbr.rel (0) target = $region81
    $region80: #{tpu_custom_call.1} parent=1 // pred_region
      %135 = dma.done [#allocation8], 16
    $region81: #{tpu_custom_call.1} parent=1 // pred_fallthru
      _
    // Predicated region
    $region82: #{tpu_custom_call.1} parent=1 // pred_check
      _
    $region83: #{tpu_custom_call.1} parent=1 // pred_check_branch
      %137 = sbr.rel (0) target = $region85
    $region84: #{tpu_custom_call.1} parent=1 // pred_region
      %138 = dma.done [#allocation11], 16
    $region85: #{tpu_custom_call.1} parent=1 // pred_fallthru
      _
    // Predicated region
    $region86: #{tpu_custom_call.1} parent=1 // pred_check
      _
    $region87: #{tpu_custom_call.1} parent=1 // pred_check_branch
      %140 = sbr.rel (0) target = $region89
    $region88: #{tpu_custom_call.1} parent=1 // pred_region
      %141 = dma.done [#allocation11], 16
    $region89: #{tpu_custom_call.1} parent=1 // pred_fallthru
      _
    // Predicated region
    $region90: #{tpu_custom_call.1} parent=1 // pred_check
      _
    $region91: #{tpu_custom_call.1} parent=1 // pred_check_branch
      %143 = sbr.rel (0) target = $region93
    $region92: #{tpu_custom_call.1} parent=1 // pred_region
      %144 = dma.done [#allocation14], 32
    $region93: #{tpu_custom_call.1} parent=1 // pred_fallthru
      _
    %v145 = vld [vmem:[#allocation2] sm:$0xff]
    %v146 = vld [vmem:[#allocation2 + $0x8] sm:$0xff]
    %v147 = vld [vmem:[%s1] sm:$0xff]
    %v148 = vld [vmem:[%s1 + $0x8] sm:$0xff]
    %v149 = vld [vmem:[%s1 + $0x10] sm:$0xff]
    %v150 = vld [vmem:[%s1 + $0x18] sm:$0xff]
    %v151 = vld [vmem:[#allocation4] sm:$0x1]
    %v153 = vlaneseq
    %v154 = vshrl.u32 %v153, 7
    %v155 = vsub.s32 0, %v154
    %v156 = vrot.slane %v151, %v155
    %vm158 = vcmask 261120
    %v160 = vsel %vm158, %v145, 0
    %v163 = vsel %vm158, %v146, 0
    %165 = vmatprep.subr.mxu0 0.0
    %166 = vmatpush1.msra.mxu0 0.0
    %167 = vmatprep.subr.mxu0 0.0
    %168 = vmatpush1.msra.mxu0 0.0
    %169 = vmatprep.subr.mxu0 0.0
    %170 = vmatpush1.msra.mxu0 0.0
    %171 = vmatprep.subr.mxu0 0.0
    %172 = vmatpush1.msra.mxu0 0.0
    %173 = vmatprep.subr.mxu0 0.0
    %174 = vmatpush1.msra.mxu0 0.0
    %175 = vmatprep.subr.mxu0 0.0
    %176 = vmatpush1.msra.mxu0 0.0
    %177 = vmatprep.subr.mxu0 0.0
    %178 = vmatpush1.msra.mxu0 0.0
    %179 = vmatprep.subr.mxu0 0.0
    %180 = vmatpush1.msra.mxu0 0.0
    %181 = vmatprep.subr.mxu0 0.0
    %182 = vmatpush1.msra.mxu0 0.0
    %183 = vmatprep.subr.mxu0 0.0
    %184 = vmatpush1.msra.mxu0 0.0
    %185 = vmatprep.subr.mxu0 0.0
    %186 = vmatpush1.msra.mxu0 0.0
    %187 = vmatprep.subr.mxu0 0.0
    %188 = vmatpush1.msra.mxu0 0.0
    %189 = vmatprep.subr.mxu0 0.0
    %190 = vmatpush1.msra.mxu0 %v150
    %191 = vmatprep.subr.mxu0 0.0
    %192 = vmatpush1.msra.mxu0 %v149
    %193 = vmatprep.subr.mxu0 0.0
    %194 = vmatpush1.msra.mxu0 %v148
    %195 = vmatprep.subr.mxu0 0.0
    %196 = vmatpush1.msra.mxu0 %v147
    %197 = vmatprep.subr.mxu0 0.0
    %198 = vmatpush2.msra.mxu0 0.0
    %199 = vmatprep.subr.mxu0 0.0
    %200 = vmatpush2.msra.mxu0 0.0
    %201 = vmatprep.subr.mxu0 0.0
    %202 = vmatpush2.msra.mxu0 0.0
    %203 = vmatprep.subr.mxu0 0.0
    %204 = vmatpush2.msra.mxu0 0.0
    %205 = vmatprep.subr.mxu0 0.0
    %206 = vmatpush2.msra.mxu0 0.0
    %207 = vmatprep.subr.mxu0 0.0
    %208 = vmatpush2.msra.mxu0 0.0
    %209 = vmatprep.subr.mxu0 0.0
    %210 = vmatpush2.msra.mxu0 0.0
    %211 = vmatprep.subr.mxu0 0.0
    %212 = vmatpush2.msra.mxu0 0.0
    %213 = vmatprep.subr.mxu0 0.0
    %214 = vmatpush2.msra.mxu0 0.0
    %215 = vmatprep.subr.mxu0 0.0
    %216 = vmatpush2.msra.mxu0 0.0
    %217 = vmatprep.subr.mxu0 0.0
    %218 = vmatpush2.msra.mxu0 0.0
    %219 = vmatprep.subr.mxu0 0.0
    %220 = vmatpush2.msra.mxu0 0.0
    %221 = vmatprep.subr.mxu0 0.0
    %222 = vmatpush2.msra.mxu0 0.0
    %223 = vmatprep.subr.mxu0 0.0
    %224 = vmatpush2.msra.mxu0 0.0
    %225 = vmatprep.subr.mxu0 0.0
    %226 = vmatpush2.msra.mxu0 0.0
    %227 = vmatprep.subr.mxu0 0.0
    %228 = vmatpush2.msra.mxu0 0.0
    %229 = vmatprep.mubr.f32.mxu0 0.0
    %230 = vmatmul.mubr.f32.gmra.mxu0 %v160
    %v231 = vpop.f32.mrf.mxu0
    %v232 = vadd.f32 %v156, %v231
    %v233 = vpop.f32.mrf.mxu0
    %234 = vmatprep.mubr.f32.mxu0 0.0
    %235 = vmatmul.mubr.f32.gmra.mxu0 %v163
    %v236 = vpop.f32.mrf.mxu0
    %v237 = vadd.f32 %v156, %v236
    %v238 = vpop.f32.mrf.mxu0
    %239 = vdwg.mxu0
    %v240 = vld [vmem:[#allocation13] sm:$0x3]
    %v241 = vld [vmem:[%s13] sm:$0xff]
    %v242 = vld [vmem:[%s13 + $0x8] sm:$0xff]
    %v243 = vld [vmem:[%s13 + $0x10] sm:$0xff]
    %v244 = vld [vmem:[%s13 + $0x18] sm:$0xff]
    %vm245 = vcmask 130048
    %v247 = vsel %vm245, %v240, 0
    %249 = vmatprep.subr.mxu0 0.0
    %250 = vmatpush1.msra.mxu0 0.0
    %251 = vmatprep.subr.mxu0 0.0
    %252 = vmatpush1.msra.mxu0 0.0
    %253 = vmatprep.subr.mxu0 0.0
    %254 = vmatpush1.msra.mxu0 0.0
    %255 = vmatprep.subr.mxu0 0.0
    %256 = vmatpush1.msra.mxu0 0.0
    %257 = vmatprep.subr.mxu0 0.0
    %258 = vmatpush1.msra.mxu0 0.0
    %259 = vmatprep.subr.mxu0 0.0
    %260 = vmatpush1.msra.mxu0 0.0
    %261 = vmatprep.subr.mxu0 0.0
    %262 = vmatpush1.msra.mxu0 0.0
    %263 = vmatprep.subr.mxu0 0.0
    %264 = vmatpush1.msra.mxu0 0.0
    %265 = vmatprep.subr.mxu0 0.0
    %266 = vmatpush1.msra.mxu0 0.0
    %267 = vmatprep.subr.mxu0 0.0
    %268 = vmatpush1.msra.mxu0 0.0
    %269 = vmatprep.subr.mxu0 0.0
    %270 = vmatpush1.msra.mxu0 0.0
    %271 = vmatprep.subr.mxu0 0.0
    %272 = vmatpush1.msra.mxu0 0.0
    %273 = vmatprep.subr.mxu0 0.0
    %274 = vmatpush1.msra.mxu0 0.0
    %275 = vmatprep.subr.mxu0 0.0
    %276 = vmatpush1.msra.mxu0 0.0
    %277 = vmatprep.subr.mxu0 0.0
    %278 = vmatpush1.msra.mxu0 %v237
    %279 = vmatprep.subr.mxu0 0.0
    %280 = vmatpush1.msra.mxu0 %v232
    %281 = vmatprep.subr.mxu0 0.0
    %282 = vmatpush2.msra.mxu0 0.0
    %283 = vmatprep.subr.mxu0 0.0
    %284 = vmatpush2.msra.mxu0 0.0
    %285 = vmatprep.subr.mxu0 0.0
    %286 = vmatpush2.msra.mxu0 0.0
    %287 = vmatprep.subr.mxu0 0.0
    %288 = vmatpush2.msra.mxu0 0.0
    %289 = vmatprep.subr.mxu0 0.0
    %290 = vmatpush2.msra.mxu0 0.0
    %291 = vmatprep.subr.mxu0 0.0
    %292 = vmatpush2.msra.mxu0 0.0
    %293 = vmatprep.subr.mxu0 0.0
    %294 = vmatpush2.msra.mxu0 0.0
    %295 = vmatprep.subr.mxu0 0.0
    %296 = vmatpush2.msra.mxu0 0.0
    %297 = vmatprep.subr.mxu0 0.0
    %298 = vmatpush2.msra.mxu0 0.0
    %299 = vmatprep.subr.mxu0 0.0
    %300 = vmatpush2.msra.mxu0 0.0
    %301 = vmatprep.subr.mxu0 0.0
    %302 = vmatpush2.msra.mxu0 0.0
    %303 = vmatprep.subr.mxu0 0.0
    %304 = vmatpush2.msra.mxu0 0.0
    %305 = vmatprep.subr.mxu0 0.0
    %306 = vmatpush2.msra.mxu0 0.0
    %307 = vmatprep.subr.mxu0 0.0
    %308 = vmatpush2.msra.mxu0 0.0
    %309 = vmatprep.subr.mxu0 0.0
    %310 = vmatpush2.msra.mxu0 0.0
    %311 = vmatprep.subr.mxu0 0.0
    %312 = vmatpush2.msra.mxu0 0.0
    %313 = vmatprep.mubr.f32.mxu0 0.0
    %314 = vmatmul.mubr.f32.gmra.mxu0 %v247
    %v315 = vpop.f32.mrf.mxu0
    %v316 = vadd.f32 0.0, %v315
    %v317 = vpop.f32.mrf.mxu0
    %318 = vdwg.mxu0
    %v319 = vmul.f32 %v232, %v232
    %v320 = vmul.f32 %v237, %v237
    %321 = vmatprep.subr.mxu0 0.0
    %322 = vmatpush1.msra.mxu0 0.0
    %323 = vmatprep.subr.mxu0 0.0
    %324 = vmatpush1.msra.mxu0 0.0
    %325 = vmatprep.subr.mxu0 0.0
    %326 = vmatpush1.msra.mxu0 0.0
    %327 = vmatprep.subr.mxu0 0.0
    %328 = vmatpush1.msra.mxu0 0.0
    %329 = vmatprep.subr.mxu0 0.0
    %330 = vmatpush1.msra.mxu0 0.0
    %331 = vmatprep.subr.mxu0 0.0
    %332 = vmatpush1.msra.mxu0 0.0
    %333 = vmatprep.subr.mxu0 0.0
    %334 = vmatpush1.msra.mxu0 0.0
    %335 = vmatprep.subr.mxu0 0.0
    %336 = vmatpush1.msra.mxu0 0.0
    %337 = vmatprep.subr.mxu0 0.0
    %338 = vmatpush1.msra.mxu0 0.0
    %339 = vmatprep.subr.mxu0 0.0
    %340 = vmatpush1.msra.mxu0 0.0
    %341 = vmatprep.subr.mxu0 0.0
    %342 = vmatpush1.msra.mxu0 0.0
    %343 = vmatprep.subr.mxu0 0.0
    %344 = vmatpush1.msra.mxu0 0.0
    %345 = vmatprep.subr.mxu0 0.0
    %346 = vmatpush1.msra.mxu0 0.0
    %347 = vmatprep.subr.mxu0 0.0
    %348 = vmatpush1.msra.mxu0 0.0
    %349 = vmatprep.subr.mxu0 0.0
    %350 = vmatpush1.msra.mxu0 %v320
    %351 = vmatprep.subr.mxu0 0.0
    %352 = vmatpush1.msra.mxu0 %v319
    %353 = vmatprep.subr.mxu0 0.0
    %354 = vmatpush2.msra.mxu0 0.0
    %355 = vmatprep.subr.mxu0 0.0
    %356 = vmatpush2.msra.mxu0 0.0
    %357 = vmatprep.subr.mxu0 0.0
    %358 = vmatpush2.msra.mxu0 0.0
    %359 = vmatprep.subr.mxu0 0.0
    %360 = vmatpush2.msra.mxu0 0.0
    %361 = vmatprep.subr.mxu0 0.0
    %362 = vmatpush2.msra.mxu0 0.0
    %363 = vmatprep.subr.mxu0 0.0
    %364 = vmatpush2.msra.mxu0 0.0
    %365 = vmatprep.subr.mxu0 0.0
    %366 = vmatpush2.msra.mxu0 0.0
    %367 = vmatprep.subr.mxu0 0.0
    %368 = vmatpush2.msra.mxu0 0.0
    %369 = vmatprep.subr.mxu0 0.0
    %370 = vmatpush2.msra.mxu0 0.0
    %371 = vmatprep.subr.mxu0 0.0
    %372 = vmatpush2.msra.mxu0 0.0
    %373 = vmatprep.subr.mxu0 0.0
    %374 = vmatpush2.msra.mxu0 0.0
    %375 = vmatprep.subr.mxu0 0.0
    %376 = vmatpush2.msra.mxu0 0.0
    %377 = vmatprep.subr.mxu0 0.0
    %378 = vmatpush2.msra.mxu0 0.0
    %379 = vmatprep.subr.mxu0 0.0
    %380 = vmatpush2.msra.mxu0 0.0
    %381 = vmatprep.subr.mxu0 0.0
    %382 = vmatpush2.msra.mxu0 0.0
    %383 = vmatprep.subr.mxu0 0.0
    %384 = vmatpush2.msra.mxu0 0.0
    %385 = vmatprep.mubr.f32.mxu0 0.0
    %386 = vmatmul.mubr.f32.gmra.mxu0 %v247
    %v387 = vpop.f32.mrf.mxu0
    %v388 = vadd.f32 0.0, %v387
    %v389 = vpop.f32.mrf.mxu0
    %390 = vdwg.mxu0
    %v392 = vsel %vm158, %v316, 0
    %394 = vmatprep.subr.mxu0 0.0
    %395 = vmatpush1.msra.mxu0 0.0
    %396 = vmatprep.subr.mxu0 0.0
    %397 = vmatpush1.msra.mxu0 0.0
    %398 = vmatprep.subr.mxu0 0.0
    %399 = vmatpush1.msra.mxu0 0.0
    %400 = vmatprep.subr.mxu0 0.0
    %401 = vmatpush1.msra.mxu0 0.0
    %402 = vmatprep.subr.mxu0 0.0
    %403 = vmatpush1.msra.mxu0 0.0
    %404 = vmatprep.subr.mxu0 0.0
    %405 = vmatpush1.msra.mxu0 0.0
    %406 = vmatprep.subr.mxu0 0.0
    %407 = vmatpush1.msra.mxu0 0.0
    %408 = vmatprep.subr.mxu0 0.0
    %409 = vmatpush1.msra.mxu0 0.0
    %410 = vmatprep.subr.mxu0 0.0
    %411 = vmatpush1.msra.mxu0 0.0
    %412 = vmatprep.subr.mxu0 0.0
    %413 = vmatpush1.msra.mxu0 0.0
    %414 = vmatprep.subr.mxu0 0.0
    %415 = vmatpush1.msra.mxu0 0.0
    %416 = vmatprep.subr.mxu0 0.0
    %417 = vmatpush1.msra.mxu0 0.0
    %418 = vmatprep.subr.mxu0 0.0
    %419 = vmatpush1.msra.mxu0 %v244
    %420 = vmatprep.subr.mxu0 0.0
    %421 = vmatpush1.msra.mxu0 %v243
    %422 = vmatprep.subr.mxu0 0.0
    %423 = vmatpush1.msra.mxu0 %v242
    %424 = vmatprep.subr.mxu0 0.0
    %425 = vmatpush1.msra.mxu0 %v241
    %426 = vmatprep.subr.mxu0 0.0
    %427 = vmatpush2.msra.mxu0 0.0
    %428 = vmatprep.subr.mxu0 0.0
    %429 = vmatpush2.msra.mxu0 0.0
    %430 = vmatprep.subr.mxu0 0.0
    %431 = vmatpush2.msra.mxu0 0.0
    %432 = vmatprep.subr.mxu0 0.0
    %433 = vmatpush2.msra.mxu0 0.0
    %434 = vmatprep.subr.mxu0 0.0
    %435 = vmatpush2.msra.mxu0 0.0
    %436 = vmatprep.subr.mxu0 0.0
    %437 = vmatpush2.msra.mxu0 0.0
    %438 = vmatprep.subr.mxu0 0.0
    %439 = vmatpush2.msra.mxu0 0.0
    %440 = vmatprep.subr.mxu0 0.0
    %441 = vmatpush2.msra.mxu0 0.0
    %442 = vmatprep.subr.mxu0 0.0
    %443 = vmatpush2.msra.mxu0 0.0
    %444 = vmatprep.subr.mxu0 0.0
    %445 = vmatpush2.msra.mxu0 0.0
    %446 = vmatprep.subr.mxu0 0.0
    %447 = vmatpush2.msra.mxu0 0.0
    %448 = vmatprep.subr.mxu0 0.0
    %449 = vmatpush2.msra.mxu0 0.0
    %450 = vmatprep.subr.mxu0 0.0
    %451 = vmatpush2.msra.mxu0 0.0
    %452 = vmatprep.subr.mxu0 0.0
    %453 = vmatpush2.msra.mxu0 0.0
    %454 = vmatprep.subr.mxu0 0.0
    %455 = vmatpush2.msra.mxu0 0.0
    %456 = vmatprep.subr.mxu0 0.0
    %457 = vmatpush2.msra.mxu0 0.0
    %458 = vmatprep.mubr.f32.mxu0 0.0
    %459 = vmatmul.mubr.f32.gmra.mxu0 %v392
    %v460 = vpop.f32.mrf.mxu0
    %v461 = vadd.f32 0.0, %v460
    %v462 = vpop.f32.mrf.mxu0
    %463 = vdwg.mxu0
    %v465 = vsel %vm158, %v388, 0
    %467 = vmatprep.subr.mxu0 0.0
    %468 = vmatpush1.msra.mxu0 0.0
    %469 = vmatprep.subr.mxu0 0.0
    %470 = vmatpush1.msra.mxu0 0.0
    %471 = vmatprep.subr.mxu0 0.0
    %472 = vmatpush1.msra.mxu0 0.0
    %473 = vmatprep.subr.mxu0 0.0
    %474 = vmatpush1.msra.mxu0 0.0
    %475 = vmatprep.subr.mxu0 0.0
    %476 = vmatpush1.msra.mxu0 0.0
    %477 = vmatprep.subr.mxu0 0.0
    %478 = vmatpush1.msra.mxu0 0.0
    %479 = vmatprep.subr.mxu0 0.0
    %480 = vmatpush1.msra.mxu0 0.0
    %481 = vmatprep.subr.mxu0 0.0
    %482 = vmatpush1.msra.mxu0 0.0
    %483 = vmatprep.subr.mxu0 0.0
    %484 = vmatpush1.msra.mxu0 0.0
    %485 = vmatprep.subr.mxu0 0.0
    %486 = vmatpush1.msra.mxu0 0.0
    %487 = vmatprep.subr.mxu0 0.0
    %488 = vmatpush1.msra.mxu0 0.0
    %489 = vmatprep.subr.mxu0 0.0
    %490 = vmatpush1.msra.mxu0 0.0
    %491 = vmatprep.subr.mxu0 0.0
    %492 = vmatpush1.msra.mxu0 %v244
    %493 = vmatprep.subr.mxu0 0.0
    %494 = vmatpush1.msra.mxu0 %v243
    %495 = vmatprep.subr.mxu0 0.0
    %496 = vmatpush1.msra.mxu0 %v242
    %497 = vmatprep.subr.mxu0 0.0
    %498 = vmatpush1.msra.mxu0 %v241
    %499 = vmatprep.subr.mxu0 0.0
    %500 = vmatpush2.msra.mxu0 0.0
    %501 = vmatprep.subr.mxu0 0.0
    %502 = vmatpush2.msra.mxu0 0.0
    %503 = vmatprep.subr.mxu0 0.0
    %504 = vmatpush2.msra.mxu0 0.0
    %505 = vmatprep.subr.mxu0 0.0
    %506 = vmatpush2.msra.mxu0 0.0
    %507 = vmatprep.subr.mxu0 0.0
    %508 = vmatpush2.msra.mxu0 0.0
    %509 = vmatprep.subr.mxu0 0.0
    %510 = vmatpush2.msra.mxu0 0.0
    %511 = vmatprep.subr.mxu0 0.0
    %512 = vmatpush2.msra.mxu0 0.0
    %513 = vmatprep.subr.mxu0 0.0
    %514 = vmatpush2.msra.mxu0 0.0
    %515 = vmatprep.subr.mxu0 0.0
    %516 = vmatpush2.msra.mxu0 0.0
    %517 = vmatprep.subr.mxu0 0.0
    %518 = vmatpush2.msra.mxu0 0.0
    %519 = vmatprep.subr.mxu0 0.0
    %520 = vmatpush2.msra.mxu0 0.0
    %521 = vmatprep.subr.mxu0 0.0
    %522 = vmatpush2.msra.mxu0 0.0
    %523 = vmatprep.subr.mxu0 0.0
    %524 = vmatpush2.msra.mxu0 0.0
    %525 = vmatprep.subr.mxu0 0.0
    %526 = vmatpush2.msra.mxu0 0.0
    %527 = vmatprep.subr.mxu0 0.0
    %528 = vmatpush2.msra.mxu0 0.0
    %529 = vmatprep.subr.mxu0 0.0
    %530 = vmatpush2.msra.mxu0 0.0
    %531 = vmatprep.mubr.f32.mxu0 0.0
    %532 = vmatmul.mubr.f32.gmra.mxu0 %v465
    %v533 = vpop.f32.mrf.mxu0
    %v534 = vadd.f32 0.0, %v533
    %v535 = vpop.f32.mrf.mxu0
    %536 = vdwg.mxu0
    %v537 = vrcp.pop 32.0
    %v538 = vmul.f32 %v461, %v537
    %v539 = vmul.f32 %v534, %v537
    %v540 = vmul.f32 %v538, %v538
    %v541 = vsub.f32 %v539, %v540
    %v542 = vmax.f32 %v541, 0.0
    %v543 = vadd.f32 %v542, 1e-05
    %v544 = vrsqrt.pop %v543
    %v545 = vld [vmem:[%s14] sm:$0xff]
    %vm546 = vcmask 64512
    %v548 = vsel %vm546, %v544, 0
    %550 = vmatprep.subr.mxu0 0.0
    %551 = vmatpush1.msra.mxu0 0.0
    %552 = vmatprep.subr.mxu0 0.0
    %553 = vmatpush1.msra.mxu0 0.0
    %554 = vmatprep.subr.mxu0 0.0
    %555 = vmatpush1.msra.mxu0 0.0
    %556 = vmatprep.subr.mxu0 0.0
    %557 = vmatpush1.msra.mxu0 0.0
    %558 = vmatprep.subr.mxu0 0.0
    %559 = vmatpush1.msra.mxu0 0.0
    %560 = vmatprep.subr.mxu0 0.0
    %561 = vmatpush1.msra.mxu0 0.0
    %562 = vmatprep.subr.mxu0 0.0
    %563 = vmatpush1.msra.mxu0 0.0
    %564 = vmatprep.subr.mxu0 0.0
    %565 = vmatpush1.msra.mxu0 0.0
    %566 = vmatprep.subr.mxu0 0.0
    %567 = vmatpush1.msra.mxu0 0.0
    %568 = vmatprep.subr.mxu0 0.0
    %569 = vmatpush1.msra.mxu0 0.0
    %570 = vmatprep.subr.mxu0 0.0
    %571 = vmatpush1.msra.mxu0 0.0
    %572 = vmatprep.subr.mxu0 0.0
    %573 = vmatpush1.msra.mxu0 0.0
    %574 = vmatprep.subr.mxu0 0.0
    %575 = vmatpush1.msra.mxu0 0.0
    %576 = vmatprep.subr.mxu0 0.0
    %577 = vmatpush1.msra.mxu0 0.0
    %578 = vmatprep.subr.mxu0 0.0
    %579 = vmatpush1.msra.mxu0 0.0
    %580 = vmatprep.subr.mxu0 0.0
    %581 = vmatpush1.msra.mxu0 %v545
    %582 = vmatprep.subr.mxu0 0.0
    %583 = vmatpush2.msra.mxu0 0.0
    %584 = vmatprep.subr.mxu0 0.0
    %585 = vmatpush2.msra.mxu0 0.0
    %586 = vmatprep.subr.mxu0 0.0
    %587 = vmatpush2.msra.mxu0 0.0
    %588 = vmatprep.subr.mxu0 0.0
    %589 = vmatpush2.msra.mxu0 0.0
    %590 = vmatprep.subr.mxu0 0.0
    %591 = vmatpush2.msra.mxu0 0.0
    %592 = vmatprep.subr.mxu0 0.0
    %593 = vmatpush2.msra.mxu0 0.0
    %594 = vmatprep.subr.mxu0 0.0
    %595 = vmatpush2.msra.mxu0 0.0
    %596 = vmatprep.subr.mxu0 0.0
    %597 = vmatpush2.msra.mxu0 0.0
    %598 = vmatprep.subr.mxu0 0.0
    %599 = vmatpush2.msra.mxu0 0.0
    %600 = vmatprep.subr.mxu0 0.0
    %601 = vmatpush2.msra.mxu0 0.0
    %602 = vmatprep.subr.mxu0 0.0
    %603 = vmatpush2.msra.mxu0 0.0
    %604 = vmatprep.subr.mxu0 0.0
    %605 = vmatpush2.msra.mxu0 0.0
    %606 = vmatprep.subr.mxu0 0.0
    %607 = vmatpush2.msra.mxu0 0.0
    %608 = vmatprep.subr.mxu0 0.0
    %609 = vmatpush2.msra.mxu0 0.0
    %610 = vmatprep.subr.mxu0 0.0
    %611 = vmatpush2.msra.mxu0 0.0
    %612 = vmatprep.subr.mxu0 0.0
    %613 = vmatpush2.msra.mxu0 0.0
    %614 = vmatprep.mubr.f32.mxu0 0.0
    %615 = vmatmul.mubr.f32.gmra.mxu0 %v548
    %v616 = vpop.f32.mrf.mxu0
    %v617 = vadd.f32 0.0, %v616
    %v618 = vpop.f32.mrf.mxu0
    %619 = vdwg.mxu0
    %v621 = vsel %vm546, %v538, 0
    %623 = vmatprep.subr.mxu0 0.0
    %624 = vmatpush1.msra.mxu0 0.0
    %625 = vmatprep.subr.mxu0 0.0
    %626 = vmatpush1.msra.mxu0 0.0
    %627 = vmatprep.subr.mxu0 0.0
    %628 = vmatpush1.msra.mxu0 0.0
    %629 = vmatprep.subr.mxu0 0.0
    %630 = vmatpush1.msra.mxu0 0.0
    %631 = vmatprep.subr.mxu0 0.0
    %632 = vmatpush1.msra.mxu0 0.0
    %633 = vmatprep.subr.mxu0 0.0
    %634 = vmatpush1.msra.mxu0 0.0
    %635 = vmatprep.subr.mxu0 0.0
    %636 = vmatpush1.msra.mxu0 0.0
    %637 = vmatprep.subr.mxu0 0.0
    %638 = vmatpush1.msra.mxu0 0.0
    %639 = vmatprep.subr.mxu0 0.0
    %640 = vmatpush1.msra.mxu0 0.0
    %641 = vmatprep.subr.mxu0 0.0
    %642 = vmatpush1.msra.mxu0 0.0
    %643 = vmatprep.subr.mxu0 0.0
    %644 = vmatpush1.msra.mxu0 0.0
    %645 = vmatprep.subr.mxu0 0.0
    %646 = vmatpush1.msra.mxu0 0.0
    %647 = vmatprep.subr.mxu0 0.0
    %648 = vmatpush1.msra.mxu0 0.0
    %649 = vmatprep.subr.mxu0 0.0
    %650 = vmatpush1.msra.mxu0 0.0
    %651 = vmatprep.subr.mxu0 0.0
    %652 = vmatpush1.msra.mxu0 0.0
    %653 = vmatprep.subr.mxu0 0.0
    %654 = vmatpush1.msra.mxu0 %v545
    %655 = vmatprep.subr.mxu0 0.0
    %656 = vmatpush2.msra.mxu0 0.0
    %657 = vmatprep.subr.mxu0 0.0
    %658 = vmatpush2.msra.mxu0 0.0
    %659 = vmatprep.subr.mxu0 0.0
    %660 = vmatpush2.msra.mxu0 0.0
    %661 = vmatprep.subr.mxu0 0.0
    %662 = vmatpush2.msra.mxu0 0.0
    %663 = vmatprep.subr.mxu0 0.0
    %664 = vmatpush2.msra.mxu0 0.0
    %665 = vmatprep.subr.mxu0 0.0
    %666 = vmatpush2.msra.mxu0 0.0
    %667 = vmatprep.subr.mxu0 0.0
    %668 = vmatpush2.msra.mxu0 0.0
    %669 = vmatprep.subr.mxu0 0.0
    %670 = vmatpush2.msra.mxu0 0.0
    %671 = vmatprep.subr.mxu0 0.0
    %672 = vmatpush2.msra.mxu0 0.0
    %673 = vmatprep.subr.mxu0 0.0
    %674 = vmatpush2.msra.mxu0 0.0
    %675 = vmatprep.subr.mxu0 0.0
    %676 = vmatpush2.msra.mxu0 0.0
    %677 = vmatprep.subr.mxu0 0.0
    %678 = vmatpush2.msra.mxu0 0.0
    %679 = vmatprep.subr.mxu0 0.0
    %680 = vmatpush2.msra.mxu0 0.0
    %681 = vmatprep.subr.mxu0 0.0
    %682 = vmatpush2.msra.mxu0 0.0
    %683 = vmatprep.subr.mxu0 0.0
    %684 = vmatpush2.msra.mxu0 0.0
    %685 = vmatprep.subr.mxu0 0.0
    %686 = vmatpush2.msra.mxu0 0.0
    %687 = vmatprep.mubr.f32.mxu0 0.0
    %688 = vmatmul.mubr.f32.gmra.mxu0 %v621
    %v689 = vpop.f32.mrf.mxu0
    %v690 = vadd.f32 0.0, %v689
    %v691 = vpop.f32.mrf.mxu0
    %692 = vdwg.mxu0
    %v693 = vld [vmem:[#allocation6] sm:$0x1]
    %v695 = vlaneseq
    %v696 = vshrl.u32 %v695, 7
    %v697 = vsub.s32 0, %v696
    %v698 = vrot.slane %v693, %v697
    %v700 = vmul.f32 %v617, %v698
    %v701 = vld [vmem:[#allocation7] sm:$0x1]
    %v702 = vmul.f32 %v690, %v700
    %v704 = vlaneseq
    %v705 = vshrl.u32 %v704, 7
    %v706 = vsub.s32 0, %v705
    %v707 = vrot.slane %v701, %v706
    %v709 = vsub.f32 %v707, %v702
    %v710 = vld [vmem:[%s12] sm:$0xff]
    %v711 = vld [vmem:[%s12 + $0x8] sm:$0xff]
    %vm712 = vcmask 15360
    %v714 = vsel %vm712, %v710, 0
    %v717 = vsel %vm712, %v711, 0
    %vm719 = vcmask 1041408
    %v721 = vsel %vm719, %v700, 0
    %723 = vmatprep.subr.mxu0 0.0
    %724 = vmatpush1.msra.mxu0 0.0
    %725 = vmatprep.subr.mxu0 0.0
    %726 = vmatpush1.msra.mxu0 0.0
    %727 = vmatprep.subr.mxu0 0.0
    %728 = vmatpush1.msra.mxu0 0.0
    %729 = vmatprep.subr.mxu0 0.0
    %730 = vmatpush1.msra.mxu0 0.0
    %731 = vmatprep.subr.mxu0 0.0
    %732 = vmatpush1.msra.mxu0 0.0
    %733 = vmatprep.subr.mxu0 0.0
    %734 = vmatpush1.msra.mxu0 0.0
    %735 = vmatprep.subr.mxu0 0.0
    %736 = vmatpush1.msra.mxu0 0.0
    %737 = vmatprep.subr.mxu0 0.0
    %738 = vmatpush1.msra.mxu0 0.0
    %739 = vmatprep.subr.mxu0 0.0
    %740 = vmatpush1.msra.mxu0 0.0
    %741 = vmatprep.subr.mxu0 0.0
    %742 = vmatpush1.msra.mxu0 0.0
    %743 = vmatprep.subr.mxu0 0.0
    %744 = vmatpush1.msra.mxu0 0.0
    %745 = vmatprep.subr.mxu0 0.0
    %746 = vmatpush1.msra.mxu0 0.0
    %747 = vmatprep.subr.mxu0 0.0
    %748 = vmatpush1.msra.mxu0 0.0
    %749 = vmatprep.subr.mxu0 0.0
    %750 = vmatpush1.msra.mxu0 0.0
    %751 = vmatprep.subr.mxu0 0.0
    %752 = vmatpush1.msra.mxu0 0.0
    %753 = vmatprep.subr.mxu0 0.0
    %754 = vmatpush1.msra.mxu0 %v721
    %755 = vmatprep.subr.mxu0 0.0
    %756 = vmatpush2.msra.mxu0 0.0
    %757 = vmatprep.subr.mxu0 0.0
    %758 = vmatpush2.msra.mxu0 0.0
    %759 = vmatprep.subr.mxu0 0.0
    %760 = vmatpush2.msra.mxu0 0.0
    %761 = vmatprep.subr.mxu0 0.0
    %762 = vmatpush2.msra.mxu0 0.0
    %763 = vmatprep.subr.mxu0 0.0
    %764 = vmatpush2.msra.mxu0 0.0
    %765 = vmatprep.subr.mxu0 0.0
    %766 = vmatpush2.msra.mxu0 0.0
    %767 = vmatprep.subr.mxu0 0.0
    %768 = vmatpush2.msra.mxu0 0.0
    %769 = vmatprep.subr.mxu0 0.0
    %770 = vmatpush2.msra.mxu0 0.0
    %771 = vmatprep.subr.mxu0 0.0
    %772 = vmatpush2.msra.mxu0 0.0
    %773 = vmatprep.subr.mxu0 0.0
    %774 = vmatpush2.msra.mxu0 0.0
    %775 = vmatprep.subr.mxu0 0.0
    %776 = vmatpush2.msra.mxu0 0.0
    %777 = vmatprep.subr.mxu0 0.0
    %778 = vmatpush2.msra.mxu0 0.0
    %779 = vmatprep.subr.mxu0 0.0
    %780 = vmatpush2.msra.mxu0 0.0
    %781 = vmatprep.subr.mxu0 0.0
    %782 = vmatpush2.msra.mxu0 0.0
    %783 = vmatprep.subr.mxu0 0.0
    %784 = vmatpush2.msra.mxu0 0.0
    %785 = vmatprep.subr.mxu0 0.0
    %786 = vmatpush2.msra.mxu0 0.0
    %787 = vmatprep.mubr.f32.mxu0 0.0
    %788 = vmatmul.mubr.f32.gmra.mxu0 %v714
    %v789 = vpop.f32.mrf.mxu0
    %v790 = vadd.f32 0.0, %v789
    %v791 = vpop.f32.mrf.mxu0
    %792 = vmatprep.mubr.f32.mxu0 0.0
    %793 = vmatmul.mubr.f32.gmra.mxu0 %v717
    %v794 = vpop.f32.mrf.mxu0
    %v795 = vadd.f32 0.0, %v794
    %v796 = vpop.f32.mrf.mxu0
    %797 = vdwg.mxu0
    %v799 = vsel %vm719, %v709, 0
    %801 = vmatprep.subr.mxu0 0.0
    %802 = vmatpush1.msra.mxu0 0.0
    %803 = vmatprep.subr.mxu0 0.0
    %804 = vmatpush1.msra.mxu0 0.0
    %805 = vmatprep.subr.mxu0 0.0
    %806 = vmatpush1.msra.mxu0 0.0
    %807 = vmatprep.subr.mxu0 0.0
    %808 = vmatpush1.msra.mxu0 0.0
    %809 = vmatprep.subr.mxu0 0.0
    %810 = vmatpush1.msra.mxu0 0.0
    %811 = vmatprep.subr.mxu0 0.0
    %812 = vmatpush1.msra.mxu0 0.0
    %813 = vmatprep.subr.mxu0 0.0
    %814 = vmatpush1.msra.mxu0 0.0
    %815 = vmatprep.subr.mxu0 0.0
    %816 = vmatpush1.msra.mxu0 0.0
    %817 = vmatprep.subr.mxu0 0.0
    %818 = vmatpush1.msra.mxu0 0.0
    %819 = vmatprep.subr.mxu0 0.0
    %820 = vmatpush1.msra.mxu0 0.0
    %821 = vmatprep.subr.mxu0 0.0
    %822 = vmatpush1.msra.mxu0 0.0
    %823 = vmatprep.subr.mxu0 0.0
    %824 = vmatpush1.msra.mxu0 0.0
    %825 = vmatprep.subr.mxu0 0.0
    %826 = vmatpush1.msra.mxu0 0.0
    %827 = vmatprep.subr.mxu0 0.0
    %828 = vmatpush1.msra.mxu0 0.0
    %829 = vmatprep.subr.mxu0 0.0
    %830 = vmatpush1.msra.mxu0 0.0
    %831 = vmatprep.subr.mxu0 0.0
    %832 = vmatpush1.msra.mxu0 %v799
    %833 = vmatprep.subr.mxu0 0.0
    %834 = vmatpush2.msra.mxu0 0.0
    %835 = vmatprep.subr.mxu0 0.0
    %836 = vmatpush2.msra.mxu0 0.0
    %837 = vmatprep.subr.mxu0 0.0
    %838 = vmatpush2.msra.mxu0 0.0
    %839 = vmatprep.subr.mxu0 0.0
    %840 = vmatpush2.msra.mxu0 0.0
    %841 = vmatprep.subr.mxu0 0.0
    %842 = vmatpush2.msra.mxu0 0.0
    %843 = vmatprep.subr.mxu0 0.0
    %844 = vmatpush2.msra.mxu0 0.0
    %845 = vmatprep.subr.mxu0 0.0
    %846 = vmatpush2.msra.mxu0 0.0
    %847 = vmatprep.subr.mxu0 0.0
    %848 = vmatpush2.msra.mxu0 0.0
    %849 = vmatprep.subr.mxu0 0.0
    %850 = vmatpush2.msra.mxu0 0.0
    %851 = vmatprep.subr.mxu0 0.0
    %852 = vmatpush2.msra.mxu0 0.0
    %853 = vmatprep.subr.mxu0 0.0
    %854 = vmatpush2.msra.mxu0 0.0
    %855 = vmatprep.subr.mxu0 0.0
    %856 = vmatpush2.msra.mxu0 0.0
    %857 = vmatprep.subr.mxu0 0.0
    %858 = vmatpush2.msra.mxu0 0.0
    %859 = vmatprep.subr.mxu0 0.0
    %860 = vmatpush2.msra.mxu0 0.0
    %861 = vmatprep.subr.mxu0 0.0
    %862 = vmatpush2.msra.mxu0 0.0
    %863 = vmatprep.subr.mxu0 0.0
    %864 = vmatpush2.msra.mxu0 0.0
    %865 = vmatprep.mubr.f32.mxu0 0.0
    %866 = vmatmul.mubr.f32.gmra.mxu0 %v714
    %v867 = vpop.f32.mrf.mxu0
    %v868 = vadd.f32 0.0, %v867
    %v869 = vpop.f32.mrf.mxu0
    %870 = vmatprep.mubr.f32.mxu0 0.0
    %871 = vmatmul.mubr.f32.gmra.mxu0 %v717
    %v872 = vpop.f32.mrf.mxu0
    %v873 = vadd.f32 0.0, %v872
    %v874 = vpop.f32.mrf.mxu0
    %875 = vdwg.mxu0
    %v876 = vmul.f32 %v232, %v790
    %v877 = vmul.f32 %v237, %v795
    %v878 = vadd.f32 %v876, %v868
    %v879 = vadd.f32 %v877, %v873
    %v880 = vld [vmem:[%s5] sm:$0xff]
    %v881 = vld [vmem:[%s5 + $0x8] sm:$0xff]
    %v882 = vld [vmem:[%s5 + $0x10] sm:$0xff]
    %v883 = vld [vmem:[%s5 + $0x18] sm:$0xff]
    %v884 = vld [vmem:[#allocation9] sm:$0x1]
    %v886 = vlaneseq
    %v887 = vshrl.u32 %v886, 7
    %v888 = vsub.s32 0, %v887
    %v889 = vrot.slane %v884, %v888
    %v892 = vsel %vm158, %v878, 0
    %v895 = vsel %vm158, %v879, 0
    %897 = vmatprep.subr.mxu0 0.0
    %898 = vmatpush1.msra.mxu0 0.0
    %899 = vmatprep.subr.mxu0 0.0
    %900 = vmatpush1.msra.mxu0 0.0
    %901 = vmatprep.subr.mxu0 0.0
    %902 = vmatpush1.msra.mxu0 0.0
    %903 = vmatprep.subr.mxu0 0.0
    %904 = vmatpush1.msra.mxu0 0.0
    %905 = vmatprep.subr.mxu0 0.0
    %906 = vmatpush1.msra.mxu0 0.0
    %907 = vmatprep.subr.mxu0 0.0
    %908 = vmatpush1.msra.mxu0 0.0
    %909 = vmatprep.subr.mxu0 0.0
    %910 = vmatpush1.msra.mxu0 0.0
    %911 = vmatprep.subr.mxu0 0.0
    %912 = vmatpush1.msra.mxu0 0.0
    %913 = vmatprep.subr.mxu0 0.0
    %914 = vmatpush1.msra.mxu0 0.0
    %915 = vmatprep.subr.mxu0 0.0
    %916 = vmatpush1.msra.mxu0 0.0
    %917 = vmatprep.subr.mxu0 0.0
    %918 = vmatpush1.msra.mxu0 0.0
    %919 = vmatprep.subr.mxu0 0.0
    %920 = vmatpush1.msra.mxu0 0.0
    %921 = vmatprep.subr.mxu0 0.0
    %922 = vmatpush1.msra.mxu0 %v883
    %923 = vmatprep.subr.mxu0 0.0
    %924 = vmatpush1.msra.mxu0 %v882
    %925 = vmatprep.subr.mxu0 0.0
    %926 = vmatpush1.msra.mxu0 %v881
    %927 = vmatprep.subr.mxu0 0.0
    %928 = vmatpush1.msra.mxu0 %v880
    %929 = vmatprep.subr.mxu0 0.0
    %930 = vmatpush2.msra.mxu0 0.0
    %931 = vmatprep.subr.mxu0 0.0
    %932 = vmatpush2.msra.mxu0 0.0
    %933 = vmatprep.subr.mxu0 0.0
    %934 = vmatpush2.msra.mxu0 0.0
    %935 = vmatprep.subr.mxu0 0.0
    %936 = vmatpush2.msra.mxu0 0.0
    %937 = vmatprep.subr.mxu0 0.0
    %938 = vmatpush2.msra.mxu0 0.0
    %939 = vmatprep.subr.mxu0 0.0
    %940 = vmatpush2.msra.mxu0 0.0
    %941 = vmatprep.subr.mxu0 0.0
    %942 = vmatpush2.msra.mxu0 0.0
    %943 = vmatprep.subr.mxu0 0.0
    %944 = vmatpush2.msra.mxu0 0.0
    %945 = vmatprep.subr.mxu0 0.0
    %946 = vmatpush2.msra.mxu0 0.0
    %947 = vmatprep.subr.mxu0 0.0
    %948 = vmatpush2.msra.mxu0 0.0
    %949 = vmatprep.subr.mxu0 0.0
    %950 = vmatpush2.msra.mxu0 0.0
    %951 = vmatprep.subr.mxu0 0.0
    %952 = vmatpush2.msra.mxu0 0.0
    %953 = vmatprep.subr.mxu0 0.0
    %954 = vmatpush2.msra.mxu0 0.0
    %955 = vmatprep.subr.mxu0 0.0
    %956 = vmatpush2.msra.mxu0 0.0
    %957 = vmatprep.subr.mxu0 0.0
    %958 = vmatpush2.msra.mxu0 0.0
    %959 = vmatprep.subr.mxu0 0.0
    %960 = vmatpush2.msra.mxu0 0.0
    %961 = vmatprep.mubr.f32.mxu0 0.0
    %962 = vmatmul.mubr.f32.gmra.mxu0 %v892
    %v963 = vpop.f32.mrf.mxu0
    %v964 = vadd.f32 %v889, %v963
    %v965 = vpop.f32.mrf.mxu0
    %966 = vmatprep.mubr.f32.mxu0 0.0
    %967 = vmatmul.mubr.f32.gmra.mxu0 %v895
    %v968 = vpop.f32.mrf.mxu0
    %v969 = vadd.f32 %v889, %v968
    %v970 = vpop.f32.mrf.mxu0
    %971 = vdwg.mxu0
    %v972 = vmax.f32 %v964, 0.0
    %v973 = vmax.f32 %v969, 0.0
    %v974 = vld [vmem:[%s7] sm:$0xff]
    %v975 = vld [vmem:[%s7 + $0x8] sm:$0xff]
    %v976 = vld [vmem:[%s7 + $0x10] sm:$0xff]
    %v977 = vld [vmem:[%s7 + $0x18] sm:$0xff]
    %v978 = vld [vmem:[#allocation10] sm:$0x1]
    %v980 = vlaneseq
    %v981 = vshrl.u32 %v980, 7
    %v982 = vsub.s32 0, %v981
    %v983 = vrot.slane %v978, %v982
    %v986 = vsel %vm158, %v972, 0
    %v989 = vsel %vm158, %v973, 0
    %991 = vmatprep.subr.mxu0 0.0
    %992 = vmatpush1.msra.mxu0 0.0
    %993 = vmatprep.subr.mxu0 0.0
    %994 = vmatpush1.msra.mxu0 0.0
    %995 = vmatprep.subr.mxu0 0.0
    %996 = vmatpush1.msra.mxu0 0.0
    %997 = vmatprep.subr.mxu0 0.0
    %998 = vmatpush1.msra.mxu0 0.0
    %999 = vmatprep.subr.mxu0 0.0
    %1000 = vmatpush1.msra.mxu0 0.0
    %1001 = vmatprep.subr.mxu0 0.0
    %1002 = vmatpush1.msra.mxu0 0.0
    %1003 = vmatprep.subr.mxu0 0.0
    %1004 = vmatpush1.msra.mxu0 0.0
    %1005 = vmatprep.subr.mxu0 0.0
    %1006 = vmatpush1.msra.mxu0 0.0
    %1007 = vmatprep.subr.mxu0 0.0
    %1008 = vmatpush1.msra.mxu0 0.0
    %1009 = vmatprep.subr.mxu0 0.0
    %1010 = vmatpush1.msra.mxu0 0.0
    %1011 = vmatprep.subr.mxu0 0.0
    %1012 = vmatpush1.msra.mxu0 0.0
    %1013 = vmatprep.subr.mxu0 0.0
    %1014 = vmatpush1.msra.mxu0 0.0
    %1015 = vmatprep.subr.mxu0 0.0
    %1016 = vmatpush1.msra.mxu0 %v977
    %1017 = vmatprep.subr.mxu0 0.0
    %1018 = vmatpush1.msra.mxu0 %v976
    %1019 = vmatprep.subr.mxu0 0.0
    %1020 = vmatpush1.msra.mxu0 %v975
    %1021 = vmatprep.subr.mxu0 0.0
    %1022 = vmatpush1.msra.mxu0 %v974
    %1023 = vmatprep.subr.mxu0 0.0
    %1024 = vmatpush2.msra.mxu0 0.0
    %1025 = vmatprep.subr.mxu0 0.0
    %1026 = vmatpush2.msra.mxu0 0.0
    %1027 = vmatprep.subr.mxu0 0.0
    %1028 = vmatpush2.msra.mxu0 0.0
    %1029 = vmatprep.subr.mxu0 0.0
    %1030 = vmatpush2.msra.mxu0 0.0
    %1031 = vmatprep.subr.mxu0 0.0
    %1032 = vmatpush2.msra.mxu0 0.0
    %1033 = vmatprep.subr.mxu0 0.0
    %1034 = vmatpush2.msra.mxu0 0.0
    %1035 = vmatprep.subr.mxu0 0.0
    %1036 = vmatpush2.msra.mxu0 0.0
    %1037 = vmatprep.subr.mxu0 0.0
    %1038 = vmatpush2.msra.mxu0 0.0
    %1039 = vmatprep.subr.mxu0 0.0
    %1040 = vmatpush2.msra.mxu0 0.0
    %1041 = vmatprep.subr.mxu0 0.0
    %1042 = vmatpush2.msra.mxu0 0.0
    %1043 = vmatprep.subr.mxu0 0.0
    %1044 = vmatpush2.msra.mxu0 0.0
    %1045 = vmatprep.subr.mxu0 0.0
    %1046 = vmatpush2.msra.mxu0 0.0
    %1047 = vmatprep.subr.mxu0 0.0
    %1048 = vmatpush2.msra.mxu0 0.0
    %1049 = vmatprep.subr.mxu0 0.0
    %1050 = vmatpush2.msra.mxu0 0.0
    %1051 = vmatprep.subr.mxu0 0.0
    %1052 = vmatpush2.msra.mxu0 0.0
    %1053 = vmatprep.subr.mxu0 0.0
    %1054 = vmatpush2.msra.mxu0 0.0
    %1055 = vmatprep.mubr.f32.mxu0 0.0
    %1056 = vmatmul.mubr.f32.gmra.mxu0 %v986
    %v1057 = vpop.f32.mrf.mxu0
    %v1058 = vadd.f32 %v983, %v1057
    %v1059 = vpop.f32.mrf.mxu0
    %1060 = vmatprep.mubr.f32.mxu0 0.0
    %1061 = vmatmul.mubr.f32.gmra.mxu0 %v989
    %v1062 = vpop.f32.mrf.mxu0
    %v1063 = vadd.f32 %v983, %v1062
    %v1064 = vpop.f32.mrf.mxu0
    %1065 = vdwg.mxu0
    %v1066 = vmax.f32 %v1058, 0.0
    %v1067 = vmax.f32 %v1063, 0.0
    %v1068 = vld [vmem:[%s9] sm:$0xff]
    %v1069 = vld [vmem:[%s9 + $0x8] sm:$0xff]
    %v1070 = vld [vmem:[%s9 + $0x10] sm:$0xff]
    %v1071 = vld [vmem:[%s9 + $0x18] sm:$0xff]
    %v1072 = vld [vmem:[#allocation12] sm:$0x1]
    %v1074 = vlaneseq
    %v1075 = vshrl.u32 %v1074, 7
    %v1076 = vsub.s32 0, %v1075
    %v1077 = vrot.slane %v1072, %v1076
    %v1080 = vsel %vm158, %v1066, 0
    %v1083 = vsel %vm158, %v1067, 0
    %1085 = vmatprep.subr.mxu0 0.0
    %1086 = vmatpush1.msra.mxu0 0.0
    %1087 = vmatprep.subr.mxu0 0.0
    %1088 = vmatpush1.msra.mxu0 0.0
    %1089 = vmatprep.subr.mxu0 0.0
    %1090 = vmatpush1.msra.mxu0 0.0
    %1091 = vmatprep.subr.mxu0 0.0
    %1092 = vmatpush1.msra.mxu0 0.0
    %1093 = vmatprep.subr.mxu0 0.0
    %1094 = vmatpush1.msra.mxu0 0.0
    %1095 = vmatprep.subr.mxu0 0.0
    %1096 = vmatpush1.msra.mxu0 0.0
    %1097 = vmatprep.subr.mxu0 0.0
    %1098 = vmatpush1.msra.mxu0 0.0
    %1099 = vmatprep.subr.mxu0 0.0
    %1100 = vmatpush1.msra.mxu0 0.0
    %1101 = vmatprep.subr.mxu0 0.0
    %1102 = vmatpush1.msra.mxu0 0.0
    %1103 = vmatprep.subr.mxu0 0.0
    %1104 = vmatpush1.msra.mxu0 0.0
    %1105 = vmatprep.subr.mxu0 0.0
    %1106 = vmatpush1.msra.mxu0 0.0
    %1107 = vmatprep.subr.mxu0 0.0
    %1108 = vmatpush1.msra.mxu0 0.0
    %1109 = vmatprep.subr.mxu0 0.0
    %1110 = vmatpush1.msra.mxu0 %v1071
    %1111 = vmatprep.subr.mxu0 0.0
    %1112 = vmatpush1.msra.mxu0 %v1070
    %1113 = vmatprep.subr.mxu0 0.0
    %1114 = vmatpush1.msra.mxu0 %v1069
    %1115 = vmatprep.subr.mxu0 0.0
    %1116 = vmatpush1.msra.mxu0 %v1068
    %1117 = vmatprep.subr.mxu0 0.0
    %1118 = vmatpush2.msra.mxu0 0.0
    %1119 = vmatprep.subr.mxu0 0.0
    %1120 = vmatpush2.msra.mxu0 0.0
    %1121 = vmatprep.subr.mxu0 0.0
    %1122 = vmatpush2.msra.mxu0 0.0
    %1123 = vmatprep.subr.mxu0 0.0
    %1124 = vmatpush2.msra.mxu0 0.0
    %1125 = vmatprep.subr.mxu0 0.0
    %1126 = vmatpush2.msra.mxu0 0.0
    %1127 = vmatprep.subr.mxu0 0.0
    %1128 = vmatpush2.msra.mxu0 0.0
    %1129 = vmatprep.subr.mxu0 0.0
    %1130 = vmatpush2.msra.mxu0 0.0
    %1131 = vmatprep.subr.mxu0 0.0
    %1132 = vmatpush2.msra.mxu0 0.0
    %1133 = vmatprep.subr.mxu0 0.0
    %1134 = vmatpush2.msra.mxu0 0.0
    %1135 = vmatprep.subr.mxu0 0.0
    %1136 = vmatpush2.msra.mxu0 0.0
    %1137 = vmatprep.subr.mxu0 0.0
    %1138 = vmatpush2.msra.mxu0 0.0
    %1139 = vmatprep.subr.mxu0 0.0
    %1140 = vmatpush2.msra.mxu0 0.0
    %1141 = vmatprep.subr.mxu0 0.0
    %1142 = vmatpush2.msra.mxu0 0.0
    %1143 = vmatprep.subr.mxu0 0.0
    %1144 = vmatpush2.msra.mxu0 0.0
    %1145 = vmatprep.subr.mxu0 0.0
    %1146 = vmatpush2.msra.mxu0 0.0
    %1147 = vmatprep.subr.mxu0 0.0
    %1148 = vmatpush2.msra.mxu0 0.0
    %1149 = vmatprep.mubr.f32.mxu0 0.0
    %1150 = vmatmul.mubr.f32.gmra.mxu0 %v1080
    %v1151 = vpop.f32.mrf.mxu0
    %v1152 = vadd.f32 %v1077, %v1151
    %v1153 = vpop.f32.mrf.mxu0
    %1154 = vmatprep.mubr.f32.mxu0 0.0
    %1155 = vmatmul.mubr.f32.gmra.mxu0 %v1083
    %v1156 = vpop.f32.mrf.mxu0
    %v1157 = vadd.f32 %v1077, %v1156
    %v1158 = vpop.f32.mrf.mxu0
    %1159 = vdwg.mxu0
    %v1160 = vxor.u32 %v1152, 2147483648
    %v1161 = vxor.u32 %v1157, 2147483648
    %v1162 = vmul.f32 %v1160, 1.442695
    %v1163 = vpow.pop %v1162
    %v1164 = vmul.f32 %v1161, 1.442695
    %v1165 = vpow.pop %v1164
    %v1166 = vadd.f32 %v1163, 1.0
    %v1167 = vadd.f32 %v1165, 1.0
    %v1168 = vrcp.pop %v1166
    %v1169 = vmul.f32 1.0, %v1168
    %v1170 = vrcp.pop %v1167
    %v1171 = vmul.f32 1.0, %v1170
    %vm1172 = vcmask 31744
    %1173 = vst.msk [vmem:[%s15] sm:$0xff] %vm1172, %v1169
    %1174 = vst.msk [vmem:[%s15 + $0x8] sm:$0xff] %vm1172, %v1171
    // Predicated region
    $region94: #{tpu_custom_call.1} parent=1 // pred_check
      _
    $region95: #{tpu_custom_call.1} parent=1 // pred_check_branch
      %1176 = sbr.rel (0) target = $region97
    $region96: #{tpu_custom_call.1} parent=1 // pred_region
      _
    $region97: #{tpu_custom_call.1} parent=1 // pred_fallthru
      _
    // Predicated region
    $region98: #{tpu_custom_call.1} parent=1 // pred_check
      _
    $region99: #{tpu_custom_call.1} parent=1 // pred_check_branch
      %1178 = sbr.rel (0) target = $region101
    $region100: #{tpu_custom_call.1} parent=1 // pred_region
      _
    $region101: #{tpu_custom_call.1} parent=1 // pred_fallthru
      _
    %1179 = vsyncpa [#allocation3], 1
    %1180 = vsyncpa [#allocation5], 1
    %1181 = vsyncpa [#allocation8], 1
    %1182 = vsyncpa [#allocation11], 1
    %1183 = vsyncpa [#allocation14], 1

</llo_original>
